<compile_context>
chip_gen: v6e
topology: v6e:2x2x1
jax: 0.10.0
libtpu: 0.0.40
codegen_flags: <defaults>
</compile_context>

<pallas_src>
import jax
import jax.numpy as jnp
import numpy as np
from jax.experimental import pallas as pl
from jax.experimental.pallas import tpu as pltpu

# ---------------- sizes ----------------
N = 2
IN_C = 8            # channels of the low-res input x
OUT_C = 4           # channels of the skip s and of the output
H = W = 8           # spatial size of x
H2, W2 = 2 * H, 2 * W
HW = H * W          # 64
HW2 = H2 * W2       # 256
CC = IN_C + OUT_C   # 12 concatenated channels
CIN1 = 16           # conv1 in-channels padded to multiple of 8 (12 -> 16)
CIN2 = 8            # conv2 in-channels padded to multiple of 8 (4 -> 8)
PAD = 128           # lane padding on each side of the flattened spatial axis
EPS = 1e-5


# ---------------- bilinear (align_corners=True) interpolation matrices ----------------
def bilinear_matrix(n_in, n_out):
    src = np.arange(n_out, dtype=np.float64) * (n_in - 1) / (n_out - 1)
    f = np.clip(np.floor(src).astype(np.int64), 0, n_in - 2)
    t = src - f
    a = np.zeros((n_out, n_in), dtype=np.float64)
    a[np.arange(n_out), f] += 1.0 - t
    a[np.arange(n_out), f + 1] += t
    return a.astype(np.float32)          # (n_out, n_in)


# ---------------- fused DecoderBlock kernel (one batch item per grid step) ----------------
def _decoder_block_kernel(x_ref, s_ref, m_ref, mask_ref,
                          ws_ref, shc_ref,
                          w2_ref, sh2_ref,
                          o_ref,
                          pad1_ref, pad2_ref, p1_ref, p2_ref):
    f32 = jnp.float32
    mask_l = mask_ref[0:1, :]                            # zero out x == 0      (dx = 0 tap)
    mask_r = mask_ref[1:2, :]                            # zero out x == W2 - 1 (dx = 2 tap)

    # ---- bilinear upsample: ONE matmul over all channels -> (IN_C, H2*W2) ----
    up = jnp.dot(x_ref[0], m_ref[...], preferred_element_type=f32)

    # ---- concat [up, s] into the lane-padded flat buffer (halo columns zeroed,
    #      data window is fully overwritten every step) ----
    pad1_ref[:, 0:PAD] = jnp.zeros((CIN1, PAD), f32)
    pad1_ref[:, PAD + HW2:PAD + HW2 + PAD] = jnp.zeros((CIN1, PAD), f32)
    pad1_ref[0:IN_C, PAD:PAD + HW2] = up                 # cat channels 0..7
    pad1_ref[IN_C:CIN1, PAD:PAD + HW2] = s_ref[0]        # cat channels 8..11 (+ zero pad rows)

    taps = [(dy, dx) for dy in range(3) for dx in range(3)]

    # ---- im2col patches of the concatenated input (feeds conv1 AND shortcut) ----
    for t, (dy, dx) in enumerate(taps):
        start = PAD + (dy - 1) * W2 + (dx - 1)
        v = pad1_ref[:, start:start + HW2]               # (CIN1, 256) shifted view
        if dx == 0:
            v = v * mask_l
        elif dx == 2:
            v = v * mask_r
        p1_ref[t * CIN1:(t + 1) * CIN1, :] = v

    # ---- conv1(3x3)+BN1 and 1x1 shortcut+BNs in ONE stacked matmul (8, 144)@(144, 256) ----
    y = jnp.dot(ws_ref[...], p1_ref[...], preferred_element_type=f32) + shc_ref[...]
    h1 = jnp.maximum(y[0:OUT_C, :], 0.0)                 # conv1 + BN1 + ReLU
    x2 = y[OUT_C:2 * OUT_C, :]                           # shortcut + BN shortcut

    # ---- conv2 (3x3) + BN2, same im2col scheme on h1 ----
    pad2_ref[...] = jnp.zeros_like(pad2_ref)
    pad2_ref[0:OUT_C, PAD:PAD + HW2] = h1
    for t, (dy, dx) in enumerate(taps):
        start = PAD + (dy - 1) * W2 + (dx - 1)
        v = pad2_ref[:, start:start + HW2]               # (CIN2, 256)
        if dx == 0:
            v = v * mask_l
        elif dx == 2:
            v = v * mask_r
        p2_ref[t * CIN2:(t + 1) * CIN2, :] = v
    x1 = jnp.dot(w2_ref[...], p2_ref[...], preferred_element_type=f32) + sh2_ref[...]

    # ---- residual add + ReLU; lane-dense NCHW-flattened store ----
    o_ref[0] = jnp.maximum(x1 + x2, 0.0)


# ---------------- parameter folding / packing (tiny, done once outside the kernel) ----------------
def fold_bn(bias, gamma, beta, mean, var):
    scale = gamma / jnp.sqrt(var + EPS)
    shift = beta + (bias - mean) * scale
    return scale.reshape(-1, 1), shift.reshape(-1, 1)     # (C, 1): channels on rows


def im2col_weight(w_hwio, ci_pad):
    co, ci = w_hwio.shape[3], w_hwio.shape[2]
    w = jnp.transpose(w_hwio, (3, 0, 1, 2))               # (co, 3, 3, ci)
    w = jnp.pad(w, ((0, 0), (0, 0), (0, 0), (0, ci_pad - ci)))
    return w.reshape(co, 9 * ci_pad)                      # columns ordered (dy, dx, c)


def decoder_block_pallas(x_nchw, s_nchw, p, m_up, masks):
    n = x_nchw.shape[0]
    x_flat = x_nchw.reshape(n, IN_C, HW)                               # (N, 8, 64)
    s_flat = s_nchw.reshape(n, OUT_C, HW2)
    s_flat = jnp.pad(s_flat, ((0, 0), (0, CIN1 - CC), (0, 0)))         # (N, 8, 256)

    sc1, sh1 = fold_bn(p['b1'], p['g1'], p['bt1'], p['m1'], p['v1'])
    sc2, sh2 = fold_bn(p['b2'], p['g2'], p['bt2'], p['m2'], p['v2'])
    scs, shs = fold_bn(p['bsc'], p['gs'], p['bts'], p['ms'], p['vs'])

    # BN scales folded into the weights; 1x1 shortcut embedded at the centre tap
    # of the conv1 im2col layout and stacked below conv1 -> single matmul.
    w1m = im2col_weight(p['w1'], CIN1) * sc1                           # (4, 144)
    w2m = im2col_weight(p['w2'], CIN2) * sc2                           # (4, 72)
    wsc = jnp.zeros((OUT_C, 9 * CIN1), jnp.float32)
    wsc = wsc.at[:, 4 * CIN1:4 * CIN1 + CC].set(p['wsc'].T * scs)      # centre tap (dy=1,dx=1)
    ws = jnp.concatenate([w1m, wsc], axis=0)                           # (8, 144)
    shc = jnp.concatenate([sh1, shs], axis=0)                          # (8, 1)

    const2d = lambda i: (0, 0)
    batch3d = lambda i: (i, 0, 0)

    out_flat = pl.pallas_call(
        _decoder_block_kernel,
        out_shape=jax.ShapeDtypeStruct((n, OUT_C, HW2), jnp.float32),
        grid=(n,),
        in_specs=[
            pl.BlockSpec((1, IN_C, HW), batch3d),                      # x (flat)
            pl.BlockSpec((1, CIN1 - IN_C, HW2), batch3d),              # s (flat, ch-padded)
            pl.BlockSpec((HW, HW2), const2d),                          # upsample matrix
            pl.BlockSpec((2, HW2), const2d),                           # boundary column masks
            pl.BlockSpec((2 * OUT_C, 9 * CIN1), const2d),              # stacked conv1+shortcut weights
            pl.BlockSpec((2 * OUT_C, 1), const2d),                     # stacked BN shifts
            pl.BlockSpec((OUT_C, 9 * CIN2), const2d),                  # conv2 weights (BN2 folded)
            pl.BlockSpec((OUT_C, 1), const2d),                         # BN2 shift
        ],
        out_specs=pl.BlockSpec((1, OUT_C, HW2), batch3d),
        scratch_shapes=[
            pltpu.VMEM((CIN1, HW2 + 2 * PAD), jnp.float32),            # padded concat (16, 512)
            pltpu.VMEM((CIN2, HW2 + 2 * PAD), jnp.float32),            # padded h1     (8, 512)
            pltpu.VMEM((9 * CIN1, HW2), jnp.float32),                  # conv1 im2col  (144, 256)
            pltpu.VMEM((9 * CIN2, HW2), jnp.float32),                  # conv2 im2col  (72, 256)
        ],
        compiler_params=pltpu.CompilerParams(
            dimension_semantics=("parallel",)),
    )(x_flat, s_flat, m_up, masks, ws, shc, w2m, sh2)

    return out_flat.reshape(n, OUT_C, H2, W2)                          # NCHW, free reshape


# ---------------- pure-JAX reference (same math, XLA ops) ----------------
def decoder_block_reference(x_nchw, s_nchw, p, a_h, a_w):
    up = jnp.einsum('ph,nchw->ncpw', a_h, x_nchw)
    up = jnp.einsum('qw,ncpw->ncpq', a_w, up)
    cat = jnp.concatenate([up, s_nchw], axis=1)
    xn = jnp.transpose(cat, (0, 2, 3, 1))

    def conv3(x, w, b):
        y = jax.lax.conv_general_dilated(
            x, w, (1, 1), 'SAME',
            dimension_numbers=('NHWC', 'HWIO', 'NHWC'))
        return y + b

    def bn(x, g, bt, m, v):
        return (x - m) / jnp.sqrt(v + EPS) * g + bt

    h1 = jax.nn.relu(bn(conv3(xn, p['w1'], p['b1']),
                        p['g1'], p['bt1'], p['m1'], p['v1']))
    x1 = bn(conv3(h1, p['w2'], p['b2']), p['g2'], p['bt2'], p['m2'], p['v2'])
    x2 = bn(jnp.einsum('nhwc,co->nhwo', xn, p['wsc']) + p['bsc'],
            p['gs'], p['bts'], p['ms'], p['vs'])
    out = jax.nn.relu(x1 + x2)
    return jnp.transpose(out, (0, 3, 1, 2))


# ---------------- deterministic parameter construction ----------------
def make_params(key):
    ks = jax.random.split(key, 18)
    f32 = jnp.float32
    p = {
        'w1': 0.1 * jax.random.normal(ks[0], (3, 3, CC, OUT_C), f32),
        'b1': 0.1 * jax.random.normal(ks[1], (OUT_C,), f32),
        'g1': 1.0 + 0.1 * jax.random.normal(ks[2], (OUT_C,), f32),
        'bt1': 0.1 * jax.random.normal(ks[3], (OUT_C,), f32),
        'm1': 0.1 * jax.random.normal(ks[4], (OUT_C,), f32),
        'v1': 1.0 + 0.2 * jax.random.uniform(ks[5], (OUT_C,), f32),
        'w2': 0.1 * jax.random.normal(ks[6], (3, 3, OUT_C, OUT_C), f32),
        'b2': 0.1 * jax.random.normal(ks[7], (OUT_C,), f32),
        'g2': 1.0 + 0.1 * jax.random.normal(ks[8], (OUT_C,), f32),
        'bt2': 0.1 * jax.random.normal(ks[9], (OUT_C,), f32),
        'm2': 0.1 * jax.random.normal(ks[10], (OUT_C,), f32),
        'v2': 1.0 + 0.2 * jax.random.uniform(ks[11], (OUT_C,), f32),
        'wsc': 0.1 * jax.random.normal(ks[12], (CC, OUT_C), f32),
        'bsc': 0.1 * jax.random.normal(ks[13], (OUT_C,), f32),
        'gs': 1.0 + 0.1 * jax.random.normal(ks[14], (OUT_C,), f32),
        'bts': 0.1 * jax.random.normal(ks[15], (OUT_C,), f32),
        'ms': 0.1 * jax.random.normal(ks[16], (OUT_C,), f32),
        'vs': 1.0 + 0.2 * jax.random.uniform(ks[17], (OUT_C,), f32),
    }
    return p


if __name__ == "__main__":
    key = jax.random.PRNGKey(0)
    k_x, k_s, k_p = jax.random.split(key, 3)

    x = jax.random.normal(k_x, (N, IN_C, H, W), jnp.float32)       # NCHW
    s = jax.random.normal(k_s, (N, OUT_C, H2, W2), jnp.float32)    # NCHW (skip)
    params = make_params(k_p)

    a_h = bilinear_matrix(H, H2)                                   # np (16, 8)
    a_w = bilinear_matrix(W, W2)                                   # np (16, 8)
    # combined H- and W-upsampling operator: up_flat = x_flat @ kron(Ah, Aw).T
    m_up = jnp.asarray(np.kron(a_h, a_w).T, dtype=jnp.float32)     # (64, 256)

    # boundary column masks for the dx=0 / dx=2 taps of the 3x3 convs
    xcol = np.arange(HW2) % W2
    masks = jnp.asarray(np.stack([(xcol > 0), (xcol < W2 - 1)]).astype(np.float32))  # (2, 256)

    out = decoder_block_pallas(x, s, params, m_up, masks)
    out = jax.block_until_ready(out)

    ref = decoder_block_reference(x, s, params,
                                  jnp.asarray(a_h), jnp.asarray(a_w))
    ref = jax.block_until_ready(ref)

    assert out.shape == (N, OUT_C, H2, W2), out.shape
    np.testing.assert_allclose(np.asarray(out), np.asarray(ref),
                               rtol=2e-4, atol=2e-4)
    print("KERNEL_OK")
</pallas_src>

<mosaic_0001>
module attributes {stable_mosaic.version = 11 : i64} {
  func.func @_decoder_block_kernel(%arg0: i32, %arg1: memref<1x8x64xf32, #tpu.memory_space<vmem>>, %arg2: memref<1x8x256xf32, #tpu.memory_space<vmem>>, %arg3: memref<64x256xf32, #tpu.memory_space<vmem>>, %arg4: memref<2x256xf32, #tpu.memory_space<vmem>>, %arg5: memref<8x144xf32, #tpu.memory_space<vmem>>, %arg6: memref<8x1xf32, #tpu.memory_space<vmem>>, %arg7: memref<4x72xf32, #tpu.memory_space<vmem>>, %arg8: memref<4x1xf32, #tpu.memory_space<vmem>>, %arg9: memref<1x4x256xf32, #tpu.memory_space<vmem>>, %arg10: memref<16x512xf32, #tpu.memory_space<vmem>>, %arg11: memref<8x512xf32, #tpu.memory_space<vmem>>, %arg12: memref<144x256xf32, #tpu.memory_space<vmem>>, %arg13: memref<72x256xf32, #tpu.memory_space<vmem>>) attributes {dimension_semantics = [#tpu.dimension_semantics<parallel>], iteration_bounds = array<i64: 2>, scalar_prefetch = 0 : i64, scratch_operands = 4 : i64, tpu.core_type = #tpu.core_type<tc>, window_params = [{transform_indices = @transform_0, window_bounds = array<i64: 1, 8, 64>}, {transform_indices = @transform_1, window_bounds = array<i64: 1, 8, 256>}, {pipeline_mode = #tpu.pipeline_mode<synchronous>, transform_indices = @transform_2, window_bounds = array<i64: 64, 256>}, {pipeline_mode = #tpu.pipeline_mode<synchronous>, transform_indices = @transform_3, window_bounds = array<i64: 2, 256>}, {pipeline_mode = #tpu.pipeline_mode<synchronous>, transform_indices = @transform_4, window_bounds = array<i64: 8, 144>}, {pipeline_mode = #tpu.pipeline_mode<synchronous>, transform_indices = @transform_5, window_bounds = array<i64: 8, 1>}, {pipeline_mode = #tpu.pipeline_mode<synchronous>, transform_indices = @transform_6, window_bounds = array<i64: 4, 72>}, {pipeline_mode = #tpu.pipeline_mode<synchronous>, transform_indices = @transform_7, window_bounds = array<i64: 4, 1>}, {transform_indices = @transform_8, window_bounds = array<i64: 1, 4, 256>}]} {
    %c0 = arith.constant 0 : index
    %c0_0 = arith.constant 0 : index
    %0 = vector.load %arg4[%c0, %c0_0] : memref<2x256xf32, #tpu.memory_space<vmem>>, vector<1x256xf32>
    %c1 = arith.constant 1 : index
    %c0_1 = arith.constant 0 : index
    %1 = vector.load %arg4[%c1, %c0_1] : memref<2x256xf32, #tpu.memory_space<vmem>>, vector<1x256xf32>
    %c0_2 = arith.constant 0 : index
    %c0_3 = arith.constant 0 : index
    %c0_4 = arith.constant 0 : index
    %2 = vector.load %arg1[%c0_2, %c0_3, %c0_4] : memref<1x8x64xf32, #tpu.memory_space<vmem>>, vector<1x8x64xf32>
    %3 = vector.shape_cast %2 : vector<1x8x64xf32> to vector<8x64xf32>
    %c0_5 = arith.constant 0 : index
    %c0_6 = arith.constant 0 : index
    %4 = vector.load %arg3[%c0_5, %c0_6] : memref<64x256xf32, #tpu.memory_space<vmem>>, vector<64x256xf32>
    %cst = arith.constant dense<0.000000e+00> : vector<8x256xf32>
    %5 = tpu.matmul %3, %4, %cst {dimension_numbers = #tpu.dot_dimension_numbers<[1], [0], [0], [1], [0, 0, 1, 1], [], []>} : vector<8x64xf32>, vector<64x256xf32>, vector<8x256xf32> -> vector<8x256xf32>
    %cst_7 = arith.constant 0.000000e+00 : f32
    %6 = vector.broadcast %cst_7 : f32 to vector<16x128xf32>
    %c0_8 = arith.constant 0 : index
    %c0_9 = arith.constant 0 : index
    %7 = vector.load %arg10[%c0_8, %c0_9] : memref<16x512xf32, #tpu.memory_space<vmem>>, vector<16x128xf32>
    tpu.vector_store %arg10[%c0_8, %c0_9], %6 {strides = array<i32>} : memref<16x512xf32, #tpu.memory_space<vmem>>, vector<16x128xf32>,
    %cst_10 = arith.constant 0.000000e+00 : f32
    %8 = vector.broadcast %cst_10 : f32 to vector<16x128xf32>
    %c0_11 = arith.constant 0 : index
    %c384 = arith.constant 384 : index
    %9 = vector.load %arg10[%c0_11, %c384] : memref<16x512xf32, #tpu.memory_space<vmem>>, vector<16x128xf32>
    tpu.vector_store %arg10[%c0_11, %c384], %8 {strides = array<i32>} : memref<16x512xf32, #tpu.memory_space<vmem>>, vector<16x128xf32>,
    %c0_12 = arith.constant 0 : index
    %c128 = arith.constant 128 : index
    %10 = vector.load %arg10[%c0_12, %c128] : memref<16x512xf32, #tpu.memory_space<vmem>>, vector<8x256xf32>
    tpu.vector_store %arg10[%c0_12, %c128], %5 {strides = array<i32>} : memref<16x512xf32, #tpu.memory_space<vmem>>, vector<8x256xf32>,
    %c0_13 = arith.constant 0 : index
    %c0_14 = arith.constant 0 : index
    %c0_15 = arith.constant 0 : index
    %11 = vector.load %arg2[%c0_13, %c0_14, %c0_15] : memref<1x8x256xf32, #tpu.memory_space<vmem>>, vector<1x8x256xf32>
    %12 = vector.shape_cast %11 : vector<1x8x256xf32> to vector<8x256xf32>
    %c8 = arith.constant 8 : index
    %c128_16 = arith.constant 128 : index
    %13 = vector.load %arg10[%c8, %c128_16] : memref<16x512xf32, #tpu.memory_space<vmem>>, vector<8x256xf32>
    tpu.vector_store %arg10[%c8, %c128_16], %12 {strides = array<i32>} : memref<16x512xf32, #tpu.memory_space<vmem>>, vector<8x256xf32>,
    %c0_17 = arith.constant 0 : index
    %c111 = arith.constant 111 : index
    %14 = vector.load %arg10[%c0_17, %c111] : memref<16x512xf32, #tpu.memory_space<vmem>>, vector<16x256xf32>
    %15 = vector.broadcast %0 : vector<1x256xf32> to vector<16x256xf32>
    %16 = arith.mulf %14, %15 : vector<16x256xf32>
    %c0_18 = arith.constant 0 : index
    %c0_19 = arith.constant 0 : index
    %17 = vector.load %arg12[%c0_18, %c0_19] : memref<144x256xf32, #tpu.memory_space<vmem>>, vector<16x256xf32>
    tpu.vector_store %arg12[%c0_18, %c0_19], %16 {strides = array<i32>} : memref<144x256xf32, #tpu.memory_space<vmem>>, vector<16x256xf32>,
    %c0_20 = arith.constant 0 : index
    %c112 = arith.constant 112 : index
    %18 = vector.load %arg10[%c0_20, %c112] : memref<16x512xf32, #tpu.memory_space<vmem>>, vector<16x256xf32>
    %c16 = arith.constant 16 : index
    %c0_21 = arith.constant 0 : index
    %19 = vector.load %arg12[%c16, %c0_21] : memref<144x256xf32, #tpu.memory_space<vmem>>, vector<16x256xf32>
    tpu.vector_store %arg12[%c16, %c0_21], %18 {strides = array<i32>} : memref<144x256xf32, #tpu.memory_space<vmem>>, vector<16x256xf32>,
    %c0_22 = arith.constant 0 : index
    %c113 = arith.constant 113 : index
    %20 = vector.load %arg10[%c0_22, %c113] : memref<16x512xf32, #tpu.memory_space<vmem>>, vector<16x256xf32>
    %21 = vector.broadcast %1 : vector<1x256xf32> to vector<16x256xf32>
    %22 = arith.mulf %20, %21 : vector<16x256xf32>
    %c32 = arith.constant 32 : index
    %c0_23 = arith.constant 0 : index
    %23 = vector.load %arg12[%c32, %c0_23] : memref<144x256xf32, #tpu.memory_space<vmem>>, vector<16x256xf32>
    tpu.vector_store %arg12[%c32, %c0_23], %22 {strides = array<i32>} : memref<144x256xf32, #tpu.memory_space<vmem>>, vector<16x256xf32>,
    %c0_24 = arith.constant 0 : index
    %c127 = arith.constant 127 : index
    %24 = vector.load %arg10[%c0_24, %c127] : memref<16x512xf32, #tpu.memory_space<vmem>>, vector<16x256xf32>
    %25 = vector.broadcast %0 : vector<1x256xf32> to vector<16x256xf32>
    %26 = arith.mulf %24, %25 : vector<16x256xf32>
    %c48 = arith.constant 48 : index
    %c0_25 = arith.constant 0 : index
    %27 = vector.load %arg12[%c48, %c0_25] : memref<144x256xf32, #tpu.memory_space<vmem>>, vector<16x256xf32>
    tpu.vector_store %arg12[%c48, %c0_25], %26 {strides = array<i32>} : memref<144x256xf32, #tpu.memory_space<vmem>>, vector<16x256xf32>,
    %c0_26 = arith.constant 0 : index
    %c128_27 = arith.constant 128 : index
    %28 = vector.load %arg10[%c0_26, %c128_27] : memref<16x512xf32, #tpu.memory_space<vmem>>, vector<16x256xf32>
    %c64 = arith.constant 64 : index
    %c0_28 = arith.constant 0 : index
    %29 = vector.load %arg12[%c64, %c0_28] : memref<144x256xf32, #tpu.memory_space<vmem>>, vector<16x256xf32>
    tpu.vector_store %arg12[%c64, %c0_28], %28 {strides = array<i32>} : memref<144x256xf32, #tpu.memory_space<vmem>>, vector<16x256xf32>,
    %c0_29 = arith.constant 0 : index
    %c129 = arith.constant 129 : index
    %30 = vector.load %arg10[%c0_29, %c129] : memref<16x512xf32, #tpu.memory_space<vmem>>, vector<16x256xf32>
    %31 = vector.broadcast %1 : vector<1x256xf32> to vector<16x256xf32>
    %32 = arith.mulf %30, %31 : vector<16x256xf32>
    %c80 = arith.constant 80 : index
    %c0_30 = arith.constant 0 : index
    %33 = vector.load %arg12[%c80, %c0_30] : memref<144x256xf32, #tpu.memory_space<vmem>>, vector<16x256xf32>
    tpu.vector_store %arg12[%c80, %c0_30], %32 {strides = array<i32>} : memref<144x256xf32, #tpu.memory_space<vmem>>, vector<16x256xf32>,
    %c0_31 = arith.constant 0 : index
    %c143 = arith.constant 143 : index
    %34 = vector.load %arg10[%c0_31, %c143] : memref<16x512xf32, #tpu.memory_space<vmem>>, vector<16x256xf32>
    %35 = vector.broadcast %0 : vector<1x256xf32> to vector<16x256xf32>
    %36 = arith.mulf %34, %35 : vector<16x256xf32>
    %c96 = arith.constant 96 : index
    %c0_32 = arith.constant 0 : index
    %37 = vector.load %arg12[%c96, %c0_32] : memref<144x256xf32, #tpu.memory_space<vmem>>, vector<16x256xf32>
    tpu.vector_store %arg12[%c96, %c0_32], %36 {strides = array<i32>} : memref<144x256xf32, #tpu.memory_space<vmem>>, vector<16x256xf32>,
    %c0_33 = arith.constant 0 : index
    %c144 = arith.constant 144 : index
    %38 = vector.load %arg10[%c0_33, %c144] : memref<16x512xf32, #tpu.memory_space<vmem>>, vector<16x256xf32>
    %c112_34 = arith.constant 112 : index
    %c0_35 = arith.constant 0 : index
    %39 = vector.load %arg12[%c112_34, %c0_35] : memref<144x256xf32, #tpu.memory_space<vmem>>, vector<16x256xf32>
    tpu.vector_store %arg12[%c112_34, %c0_35], %38 {strides = array<i32>} : memref<144x256xf32, #tpu.memory_space<vmem>>, vector<16x256xf32>,
    %c0_36 = arith.constant 0 : index
    %c145 = arith.constant 145 : index
    %40 = vector.load %arg10[%c0_36, %c145] : memref<16x512xf32, #tpu.memory_space<vmem>>, vector<16x256xf32>
    %41 = vector.broadcast %1 : vector<1x256xf32> to vector<16x256xf32>
    %42 = arith.mulf %40, %41 : vector<16x256xf32>
    %c128_37 = arith.constant 128 : index
    %c0_38 = arith.constant 0 : index
    %43 = vector.load %arg12[%c128_37, %c0_38] : memref<144x256xf32, #tpu.memory_space<vmem>>, vector<16x256xf32>
    tpu.vector_store %arg12[%c128_37, %c0_38], %42 {strides = array<i32>} : memref<144x256xf32, #tpu.memory_space<vmem>>, vector<16x256xf32>,
    %c0_39 = arith.constant 0 : index
    %c0_40 = arith.constant 0 : index
    %44 = vector.load %arg5[%c0_39, %c0_40] : memref<8x144xf32, #tpu.memory_space<vmem>>, vector<8x144xf32>
    %c0_41 = arith.constant 0 : index
    %c0_42 = arith.constant 0 : index
    %45 = vector.load %arg12[%c0_41, %c0_42] : memref<144x256xf32, #tpu.memory_space<vmem>>, vector<144x256xf32>
    %cst_43 = arith.constant dense<0.000000e+00> : vector<8x256xf32>
    %46 = tpu.matmul %44, %45, %cst_43 {dimension_numbers = #tpu.dot_dimension_numbers<[1], [0], [0], [1], [0, 0, 1, 1], [], []>} : vector<8x144xf32>, vector<144x256xf32>, vector<8x256xf32> -> vector<8x256xf32>
    %c0_44 = arith.constant 0 : index
    %c0_45 = arith.constant 0 : index
    %47 = vector.load %arg6[%c0_44, %c0_45] : memref<8x1xf32, #tpu.memory_space<vmem>>, vector<8x1xf32>
    %48 = vector.broadcast %47 : vector<8x1xf32> to vector<8x256xf32>
    %49 = arith.addf %46, %48 : vector<8x256xf32>
    %50 = vector.extract_strided_slice %49 {offsets = [0, 0], sizes = [4, 256], strides = [1, 1]} : vector<8x256xf32> to vector<4x256xf32>
    %cst_46 = arith.constant 0.000000e+00 : f32
    %51 = vector.broadcast %cst_46 : f32 to vector<4x256xf32>
    %52 = arith.maximumf %50, %51 : vector<4x256xf32>
    %53 = vector.extract_strided_slice %49 {offsets = [4, 0], sizes = [4, 256], strides = [1, 1]} : vector<8x256xf32> to vector<4x256xf32>
    %cst_47 = arith.constant 0.000000e+00 : f32
    %54 = vector.broadcast %cst_47 : f32 to vector<8x512xf32>
    %c0_48 = arith.constant 0 : index
    %c0_49 = arith.constant 0 : index
    %55 = vector.load %arg11[%c0_48, %c0_49] : memref<8x512xf32, #tpu.memory_space<vmem>>, vector<8x512xf32>
    tpu.vector_store %arg11[%c0_48, %c0_49], %54 {strides = array<i32>} : memref<8x512xf32, #tpu.memory_space<vmem>>, vector<8x512xf32>,
    %c0_50 = arith.constant 0 : index
    %c128_51 = arith.constant 128 : index
    %56 = vector.load %arg11[%c0_50, %c128_51] : memref<8x512xf32, #tpu.memory_space<vmem>>, vector<4x256xf32>
    tpu.vector_store %arg11[%c0_50, %c128_51], %52 {strides = array<i32>} : memref<8x512xf32, #tpu.memory_space<vmem>>, vector<4x256xf32>,
    %c0_52 = arith.constant 0 : index
    %c111_53 = arith.constant 111 : index
    %57 = vector.load %arg11[%c0_52, %c111_53] : memref<8x512xf32, #tpu.memory_space<vmem>>, vector<8x256xf32>
    %58 = vector.broadcast %0 : vector<1x256xf32> to vector<8x256xf32>
    %59 = arith.mulf %57, %58 : vector<8x256xf32>
    %c0_54 = arith.constant 0 : index
    %c0_55 = arith.constant 0 : index
    %60 = vector.load %arg13[%c0_54, %c0_55] : memref<72x256xf32, #tpu.memory_space<vmem>>, vector<8x256xf32>
    tpu.vector_store %arg13[%c0_54, %c0_55], %59 {strides = array<i32>} : memref<72x256xf32, #tpu.memory_space<vmem>>, vector<8x256xf32>,
    %c0_56 = arith.constant 0 : index
    %c112_57 = arith.constant 112 : index
    %61 = vector.load %arg11[%c0_56, %c112_57] : memref<8x512xf32, #tpu.memory_space<vmem>>, vector<8x256xf32>
    %c8_58 = arith.constant 8 : index
    %c0_59 = arith.constant 0 : index
    %62 = vector.load %arg13[%c8_58, %c0_59] : memref<72x256xf32, #tpu.memory_space<vmem>>, vector<8x256xf32>
    tpu.vector_store %arg13[%c8_58, %c0_59], %61 {strides = array<i32>} : memref<72x256xf32, #tpu.memory_space<vmem>>, vector<8x256xf32>,
    %c0_60 = arith.constant 0 : index
    %c113_61 = arith.constant 113 : index
    %63 = vector.load %arg11[%c0_60, %c113_61] : memref<8x512xf32, #tpu.memory_space<vmem>>, vector<8x256xf32>
    %64 = vector.broadcast %1 : vector<1x256xf32> to vector<8x256xf32>
    %65 = arith.mulf %63, %64 : vector<8x256xf32>
    %c16_62 = arith.constant 16 : index
    %c0_63 = arith.constant 0 : index
    %66 = vector.load %arg13[%c16_62, %c0_63] : memref<72x256xf32, #tpu.memory_space<vmem>>, vector<8x256xf32>
    tpu.vector_store %arg13[%c16_62, %c0_63], %65 {strides = array<i32>} : memref<72x256xf32, #tpu.memory_space<vmem>>, vector<8x256xf32>,
    %c0_64 = arith.constant 0 : index
    %c127_65 = arith.constant 127 : index
    %67 = vector.load %arg11[%c0_64, %c127_65] : memref<8x512xf32, #tpu.memory_space<vmem>>, vector<8x256xf32>
    %68 = vector.broadcast %0 : vector<1x256xf32> to vector<8x256xf32>
    %69 = arith.mulf %67, %68 : vector<8x256xf32>
    %c24 = arith.constant 24 : index
    %c0_66 = arith.constant 0 : index
    %70 = vector.load %arg13[%c24, %c0_66] : memref<72x256xf32, #tpu.memory_space<vmem>>, vector<8x256xf32>
    tpu.vector_store %arg13[%c24, %c0_66], %69 {strides = array<i32>} : memref<72x256xf32, #tpu.memory_space<vmem>>, vector<8x256xf32>,
    %c0_67 = arith.constant 0 : index
    %c128_68 = arith.constant 128 : index
    %71 = vector.load %arg11[%c0_67, %c128_68] : memref<8x512xf32, #tpu.memory_space<vmem>>, vector<8x256xf32>
    %c32_69 = arith.constant 32 : index
    %c0_70 = arith.constant 0 : index
    %72 = vector.load %arg13[%c32_69, %c0_70] : memref<72x256xf32, #tpu.memory_space<vmem>>, vector<8x256xf32>
    tpu.vector_store %arg13[%c32_69, %c0_70], %71 {strides = array<i32>} : memref<72x256xf32, #tpu.memory_space<vmem>>, vector<8x256xf32>,
    %c0_71 = arith.constant 0 : index
    %c129_72 = arith.constant 129 : index
    %73 = vector.load %arg11[%c0_71, %c129_72] : memref<8x512xf32, #tpu.memory_space<vmem>>, vector<8x256xf32>
    %74 = vector.broadcast %1 : vector<1x256xf32> to vector<8x256xf32>
    %75 = arith.mulf %73, %74 : vector<8x256xf32>
    %c40 = arith.constant 40 : index
    %c0_73 = arith.constant 0 : index
    %76 = vector.load %arg13[%c40, %c0_73] : memref<72x256xf32, #tpu.memory_space<vmem>>, vector<8x256xf32>
    tpu.vector_store %arg13[%c40, %c0_73], %75 {strides = array<i32>} : memref<72x256xf32, #tpu.memory_space<vmem>>, vector<8x256xf32>,
    %c0_74 = arith.constant 0 : index
    %c143_75 = arith.constant 143 : index
    %77 = vector.load %arg11[%c0_74, %c143_75] : memref<8x512xf32, #tpu.memory_space<vmem>>, vector<8x256xf32>
    %78 = vector.broadcast %0 : vector<1x256xf32> to vector<8x256xf32>
    %79 = arith.mulf %77, %78 : vector<8x256xf32>
    %c48_76 = arith.constant 48 : index
    %c0_77 = arith.constant 0 : index
    %80 = vector.load %arg13[%c48_76, %c0_77] : memref<72x256xf32, #tpu.memory_space<vmem>>, vector<8x256xf32>
    tpu.vector_store %arg13[%c48_76, %c0_77], %79 {strides = array<i32>} : memref<72x256xf32, #tpu.memory_space<vmem>>, vector<8x256xf32>,
    %c0_78 = arith.constant 0 : index
    %c144_79 = arith.constant 144 : index
    %81 = vector.load %arg11[%c0_78, %c144_79] : memref<8x512xf32, #tpu.memory_space<vmem>>, vector<8x256xf32>
    %c56 = arith.constant 56 : index
    %c0_80 = arith.constant 0 : index
    %82 = vector.load %arg13[%c56, %c0_80] : memref<72x256xf32, #tpu.memory_space<vmem>>, vector<8x256xf32>
    tpu.vector_store %arg13[%c56, %c0_80], %81 {strides = array<i32>} : memref<72x256xf32, #tpu.memory_space<vmem>>, vector<8x256xf32>,
    %c0_81 = arith.constant 0 : index
    %c145_82 = arith.constant 145 : index
    %83 = vector.load %arg11[%c0_81, %c145_82] : memref<8x512xf32, #tpu.memory_space<vmem>>, vector<8x256xf32>
    %84 = vector.broadcast %1 : vector<1x256xf32> to vector<8x256xf32>
    %85 = arith.mulf %83, %84 : vector<8x256xf32>
    %c64_83 = arith.constant 64 : index
    %c0_84 = arith.constant 0 : index
    %86 = vector.load %arg13[%c64_83, %c0_84] : memref<72x256xf32, #tpu.memory_space<vmem>>, vector<8x256xf32>
    tpu.vector_store %arg13[%c64_83, %c0_84], %85 {strides = array<i32>} : memref<72x256xf32, #tpu.memory_space<vmem>>, vector<8x256xf32>,
    %c0_85 = arith.constant 0 : index
    %c0_86 = arith.constant 0 : index
    %87 = vector.load %arg7[%c0_85, %c0_86] : memref<4x72xf32, #tpu.memory_space<vmem>>, vector<4x72xf32>
    %c0_87 = arith.constant 0 : index
    %c0_88 = arith.constant 0 : index
    %88 = vector.load %arg13[%c0_87, %c0_88] : memref<72x256xf32, #tpu.memory_space<vmem>>, vector<72x256xf32>
    %cst_89 = arith.constant dense<0.000000e+00> : vector<4x256xf32>
    %89 = tpu.matmul %87, %88, %cst_89 {dimension_numbers = #tpu.dot_dimension_numbers<[1], [0], [0], [1], [0, 0, 1, 1], [], []>} : vector<4x72xf32>, vector<72x256xf32>, vector<4x256xf32> -> vector<4x256xf32>
    %c0_90 = arith.constant 0 : index
    %c0_91 = arith.constant 0 : index
    %90 = vector.load %arg8[%c0_90, %c0_91] : memref<4x1xf32, #tpu.memory_space<vmem>>, vector<4x1xf32>
    %91 = vector.broadcast %90 : vector<4x1xf32> to vector<4x256xf32>
    %92 = arith.addf %89, %91 : vector<4x256xf32>
    %93 = arith.addf %92, %53 : vector<4x256xf32>
    %cst_92 = arith.constant 0.000000e+00 : f32
    %94 = vector.broadcast %cst_92 : f32 to vector<4x256xf32>
    %95 = arith.maximumf %93, %94 : vector<4x256xf32>
    %c0_93 = arith.constant 0 : index
    %c0_94 = arith.constant 0 : index
    %c0_95 = arith.constant 0 : index
    %96 = vector.load %arg9[%c0_93, %c0_94, %c0_95] : memref<1x4x256xf32, #tpu.memory_space<vmem>>, vector<1x4x256xf32>
    %97 = vector.shape_cast %96 : vector<1x4x256xf32> to vector<4x256xf32>
    %98 = vector.shape_cast %95 : vector<4x256xf32> to vector<1x4x256xf32>
    tpu.vector_store %arg9[%c0_93, %c0_94, %c0_95], %98 {strides = array<i32>} : memref<1x4x256xf32, #tpu.memory_space<vmem>>, vector<1x4x256xf32>,
    return
  }
  func.func @transform_0(%arg0: i32) -> (i32, i32, i32) {
    %c0_i32 = arith.constant 0 : i32
    %c0_i32_0 = arith.constant 0 : i32
    %c0_i32_1 = arith.constant 0 : i32
    return %arg0, %c0_i32, %c0_i32_0 : i32, i32, i32
  }
  func.func @transform_1(%arg0: i32) -> (i32, i32, i32) {
    %c0_i32 = arith.constant 0 : i32
    %c0_i32_0 = arith.constant 0 : i32
    %c0_i32_1 = arith.constant 0 : i32
    return %arg0, %c0_i32, %c0_i32_0 : i32, i32, i32
  }
  func.func @transform_2(%arg0: i32) -> (i32, i32) {
    %c0_i32 = arith.constant 0 : i32
    %c0_i32_0 = arith.constant 0 : i32
    %c0_i32_1 = arith.constant 0 : i32
    return %c0_i32, %c0_i32_0 : i32, i32
  }
  func.func @transform_3(%arg0: i32) -> (i32, i32) {
    %c0_i32 = arith.constant 0 : i32
    %c0_i32_0 = arith.constant 0 : i32
    %c0_i32_1 = arith.constant 0 : i32
    return %c0_i32, %c0_i32_0 : i32, i32
  }
  func.func @transform_4(%arg0: i32) -> (i32, i32) {
    %c0_i32 = arith.constant 0 : i32
    %c0_i32_0 = arith.constant 0 : i32
    %c0_i32_1 = arith.constant 0 : i32
    return %c0_i32, %c0_i32_0 : i32, i32
  }
  func.func @transform_5(%arg0: i32) -> (i32, i32) {
    %c0_i32 = arith.constant 0 : i32
    %c0_i32_0 = arith.constant 0 : i32
    %c0_i32_1 = arith.constant 0 : i32
    return %c0_i32, %c0_i32_0 : i32, i32
  }
  func.func @transform_6(%arg0: i32) -> (i32, i32) {
    %c0_i32 = arith.constant 0 : i32
    %c0_i32_0 = arith.constant 0 : i32
    %c0_i32_1 = arith.constant 0 : i32
    return %c0_i32, %c0_i32_0 : i32, i32
  }
  func.func @transform_7(%arg0: i32) -> (i32, i32) {
    %c0_i32 = arith.constant 0 : i32
    %c0_i32_0 = arith.constant 0 : i32
    %c0_i32_1 = arith.constant 0 : i32
    return %c0_i32, %c0_i32_0 : i32, i32
  }
  func.func @transform_8(%arg0: i32) -> (i32, i32, i32) {
    %c0_i32 = arith.constant 0 : i32
    %c0_i32_0 = arith.constant 0 : i32
    %c0_i32_1 = arith.constant 0 : i32
    return %arg0, %c0_i32, %c0_i32_0 : i32, i32, i32
  }
}

</mosaic_0001>

<llo_original>
// kernel: tpu_custom_call.1
$region0: #{tpu_custom_call.1}
  #allocation0 [shape = 'u32[]', space=smem, size = 0x4, offset = 0x4, fixed_abs, tag = 'smem constant byte address 0x4 - core index']
  #allocation1 [shape = 'u32[144,128]{1,0:T(1,128)}', space=vmem, size = 0x12000, scoped, tag = 'internal scratch']
  #allocation2 [shape = 'f32[16,512]{1,0:T(8,128)}', space=vmem, size = 0x8000, scoped, tag = 'scratch operand']
  #allocation3 [shape = 'f32[8,512]{1,0:T(8,128)}', space=vmem, size = 0x4000, scoped, tag = 'scratch operand']
  #allocation4 [shape = 'f32[144,256]{1,0:T(8,128)}', space=vmem, size = 0x24000, scoped, tag = 'scratch operand']
  #allocation5 [shape = 'f32[72,256]{1,0:T(8,128)}', space=vmem, size = 0x12000, scoped, tag = 'scratch operand']
  %s0 = inlined_call_operand.hbm [shape: f32[2,8,64], index: 0, kind: input, shape index: {}]
  %s1 = inlined_call_operand.hbm [shape: f32[2,8,256], index: 1, kind: input, shape index: {}]
  %s2 = inlined_call_operand.hbm [shape: f32[64,256], index: 2, kind: input, shape index: {}]
  %s3 = inlined_call_operand.vmem [shape: f32[2,256], index: 3, kind: input, shape index: {}]
  %s4 = inlined_call_operand.vmem [shape: f32[8,144], index: 4, kind: input, shape index: {}]
  %s5 = inlined_call_operand.vmem [shape: f32[8,1], index: 5, kind: input, shape index: {}]
  %s6 = inlined_call_operand.vmem [shape: f32[4,72], index: 6, kind: input, shape index: {}]
  %s7 = inlined_call_operand.vmem [shape: f32[4,1], index: 7, kind: input, shape index: {}]
  %s8 = inlined_call_operand.hbm [shape: f32[2,4,256], index: 8, kind: output, shape index: {}]
  %s9 = sld [smem:[#allocation0]]
  $region77: #{tpu_custom_call.1} parent=0
    _
  %s11 = ssub.s32 1, %s9
  %s12 = scalar_select 0, %s11, %s9
  $region1: #{tpu_custom_call.1} parent=0
    #allocation6 [shape = 'u8[8192]{0}', space=vmem, size = 0x2000, scoped, tag = 'input window, operand 0']
    #allocation7 [shape = 's32[2]{0}', space=sflag, size = 0x8, scoped, tag = 'scoped memory for tpu_custom_call.1']
    #allocation8 [shape = 's32[2]{0}', space=sflag, size = 0x8, scoped, tag = 'scoped memory for tpu_custom_call.1']
    #allocation9 [shape = 'u8[16384]{0}', space=vmem, size = 0x4000, scoped, tag = 'input window, operand 1']
    #allocation10 [shape = 's32[2]{0}', space=sflag, size = 0x8, scoped, tag = 'scoped memory for tpu_custom_call.1']
    #allocation11 [shape = 'u8[65536]{0}', space=vmem, size = 0x10000, scoped, tag = 'input window, operand 2, single buffered']
    #allocation12 [shape = 'u8[8192]{0}', space=vmem, size = 0x2000, scoped, tag = 'output window, operand 0']
    %13 = vsyncpa [#allocation7], 0
    %s14 = scalar_lea.sflag [#allocation7], 1
    %15 = vsyncpa %s14, 0
    %16 = vsyncpa [#allocation10], 0
    %s17 = scalar_lea.sflag [#allocation10], 1
    %18 = vsyncpa %s17, 0
    %19 = vsyncpa [#allocation8], 0
    %s20 = scalar_lea.sflag [#allocation8], 1
    %21 = vsyncpa %s20, 0
    loop: start=0, step=1, limit=4
    $region2: #{tpu_custom_call.1} parent=1 // loop_pre_header
      _
    $region3: #{tpu_custom_call.1} parent=1 // loop_header
      %s23 = sphi 0, %s27
      %p24 = scmp.ge.s32.totalorder %s23, 4
      %s33 = sphi 0, %s35
      %s36 = sphi 0, %s33
      %s37 = sphi 0, %s36
      %s53 = sphi 0, %s37
      %s59 = sphi 0, %s61
      %s62 = sphi 0, %s59
      %s63 = sphi 0, %s62
      %s79 = sphi 0, %s63
      %s83 = sphi 0, %s83
      %s85 = sphi 0, %s83
      %s86 = sphi 0, %s85
      %s100 = sphi 0, %s86
      %s104 = sphi 0, %s104
      %s106 = sphi 0, %s104
      %s107 = sphi 0, %s106
      %s121 = sphi 0, %s107
      %s125 = sphi 0, %s125
      %s127 = sphi 0, %s125
      %s128 = sphi 0, %s127
      %s142 = sphi 0, %s128
      %s146 = sphi 0, %s146
      %s148 = sphi 0, %s146
      %s149 = sphi 0, %s148
      %s163 = sphi 0, %s149
      %s167 = sphi 0, %s167
      %s169 = sphi 0, %s167
      %s170 = sphi 0, %s169
      %s184 = sphi 0, %s170
      %s188 = sphi 0, %s188
      %s190 = sphi 0, %s188
      %s191 = sphi 0, %s190
      %s205 = sphi 0, %s191
      %s211 = sphi 0, %s213
      %s214 = sphi 0, %s211
      %s215 = sphi 0, %s214
      %s231 = sphi 0, %s215
    $region4: #{tpu_custom_call.1} parent=1 // loop_header_branch
      %26 = sbr.rel (%p24) target = $region8
    $region5: #{tpu_custom_call.1} parent=1 // loop_body
      %s28 = ssub.s32 %s23, 1
      %s29 = ssub.s32 %s23, 2
      %s30 = sadd.s32 %s23, 1
      %s31 = ssub.s32 %s23, %s30
      %p32 = scmp.eq.s32.totalorder %s31, 0
      %s34 = sadd.s32 %s33, 1
      %s35 = scalar_select %p32, %s33, %s34
      %p38 = pneg %p32
      %p39 = scmp.eq.s32.totalorder %s23, 1
      %p40 = por %p38, %p39
      %p41 = scmp.ne.s32.totalorder %s33, %s36
      %p42 = scmp.eq.s32.totalorder %s23, 0
      %p43 = por %p41, %p42
      %p44 = scmp.ne.s32.totalorder %s33, %s36
      %p45 = scmp.eq.s32.totalorder %s28, 1
      %p46 = por %p44, %p45
      %p47 = scmp.ne.s32.totalorder %s36, %s37
      %p48 = scmp.eq.s32.totalorder %s28, 0
      %p49 = por %p47, %p48
      %p50 = scmp.ne.s32.totalorder %s36, %s37
      %p51 = scmp.eq.s32.totalorder %s29, 1
      %p52 = por %p50, %p51
      %p54 = scmp.ne.s32.totalorder %s37, %s53
      %p55 = scmp.eq.s32.totalorder %s29, 0
      %p56 = por %p54, %p55
      %s57 = ssub.s32 %s23, %s30
      %p58 = scmp.eq.s32.totalorder %s57, 0
      %s60 = sadd.s32 %s59, 1
      %s61 = scalar_select %p58, %s59, %s60
      %p64 = pneg %p58
      %p65 = scmp.eq.s32.totalorder %s23, 1
      %p66 = por %p64, %p65
      %p67 = scmp.ne.s32.totalorder %s59, %s62
      %p68 = scmp.eq.s32.totalorder %s23, 0
      %p69 = por %p67, %p68
      %p70 = scmp.ne.s32.totalorder %s59, %s62
      %p71 = scmp.eq.s32.totalorder %s28, 1
      %p72 = por %p70, %p71
      %p73 = scmp.ne.s32.totalorder %s62, %s63
      %p74 = scmp.eq.s32.totalorder %s28, 0
      %p75 = por %p73, %p74
      %p76 = scmp.ne.s32.totalorder %s62, %s63
      %p77 = scmp.eq.s32.totalorder %s29, 1
      %p78 = por %p76, %p77
      %p80 = scmp.ne.s32.totalorder %s63, %s79
      %p81 = scmp.eq.s32.totalorder %s29, 0
      %p82 = por %p80, %p81
      %s84 = sadd.s32 %s83, 1
      %p87 = scmp.eq.s32.totalorder %s23, 1
      %p88 = scmp.ne.s32.totalorder %s83, %s85
      %p89 = scmp.eq.s32.totalorder %s23, 0
      %p90 = por %p88, %p89
      %p91 = scmp.ne.s32.totalorder %s83, %s85
      %p92 = scmp.eq.s32.totalorder %s28, 1
      %p93 = por %p91, %p92
      %p94 = scmp.ne.s32.totalorder %s85, %s86
      %p95 = scmp.eq.s32.totalorder %s28, 0
      %p96 = por %p94, %p95
      %p97 = scmp.ne.s32.totalorder %s85, %s86
      %p98 = scmp.eq.s32.totalorder %s29, 1
      %p99 = por %p97, %p98
      %p101 = scmp.ne.s32.totalorder %s86, %s100
      %p102 = scmp.eq.s32.totalorder %s29, 0
      %p103 = por %p101, %p102
      %s105 = sadd.s32 %s104, 1
      %p108 = scmp.eq.s32.totalorder %s23, 1
      %p109 = scmp.ne.s32.totalorder %s104, %s106
      %p110 = scmp.eq.s32.totalorder %s23, 0
      %p111 = por %p109, %p110
      %p112 = scmp.ne.s32.totalorder %s104, %s106
      %p113 = scmp.eq.s32.totalorder %s28, 1
      %p114 = por %p112, %p113
      %p115 = scmp.ne.s32.totalorder %s106, %s107
      %p116 = scmp.eq.s32.totalorder %s28, 0
      %p117 = por %p115, %p116
      %p118 = scmp.ne.s32.totalorder %s106, %s107
      %p119 = scmp.eq.s32.totalorder %s29, 1
      %p120 = por %p118, %p119
      %p122 = scmp.ne.s32.totalorder %s107, %s121
      %p123 = scmp.eq.s32.totalorder %s29, 0
      %p124 = por %p122, %p123
      %s126 = sadd.s32 %s125, 1
      %p129 = scmp.eq.s32.totalorder %s23, 1
      %p130 = scmp.ne.s32.totalorder %s125, %s127
      %p131 = scmp.eq.s32.totalorder %s23, 0
      %p132 = por %p130, %p131
      %p133 = scmp.ne.s32.totalorder %s125, %s127
      %p134 = scmp.eq.s32.totalorder %s28, 1
      %p135 = por %p133, %p134
      %p136 = scmp.ne.s32.totalorder %s127, %s128
      %p137 = scmp.eq.s32.totalorder %s28, 0
      %p138 = por %p136, %p137
      %p139 = scmp.ne.s32.totalorder %s127, %s128
      %p140 = scmp.eq.s32.totalorder %s29, 1
      %p141 = por %p139, %p140
      %p143 = scmp.ne.s32.totalorder %s128, %s142
      %p144 = scmp.eq.s32.totalorder %s29, 0
      %p145 = por %p143, %p144
      %s147 = sadd.s32 %s146, 1
      %p150 = scmp.eq.s32.totalorder %s23, 1
      %p151 = scmp.ne.s32.totalorder %s146, %s148
      %p152 = scmp.eq.s32.totalorder %s23, 0
      %p153 = por %p151, %p152
      %p154 = scmp.ne.s32.totalorder %s146, %s148
      %p155 = scmp.eq.s32.totalorder %s28, 1
      %p156 = por %p154, %p155
      %p157 = scmp.ne.s32.totalorder %s148, %s149
      %p158 = scmp.eq.s32.totalorder %s28, 0
      %p159 = por %p157, %p158
      %p160 = scmp.ne.s32.totalorder %s148, %s149
      %p161 = scmp.eq.s32.totalorder %s29, 1
      %p162 = por %p160, %p161
      %p164 = scmp.ne.s32.totalorder %s149, %s163
      %p165 = scmp.eq.s32.totalorder %s29, 0
      %p166 = por %p164, %p165
      %s168 = sadd.s32 %s167, 1
      %p171 = scmp.eq.s32.totalorder %s23, 1
      %p172 = scmp.ne.s32.totalorder %s167, %s169
      %p173 = scmp.eq.s32.totalorder %s23, 0
      %p174 = por %p172, %p173
      %p175 = scmp.ne.s32.totalorder %s167, %s169
      %p176 = scmp.eq.s32.totalorder %s28, 1
      %p177 = por %p175, %p176
      %p178 = scmp.ne.s32.totalorder %s169, %s170
      %p179 = scmp.eq.s32.totalorder %s28, 0
      %p180 = por %p178, %p179
      %p181 = scmp.ne.s32.totalorder %s169, %s170
      %p182 = scmp.eq.s32.totalorder %s29, 1
      %p183 = por %p181, %p182
      %p185 = scmp.ne.s32.totalorder %s170, %s184
      %p186 = scmp.eq.s32.totalorder %s29, 0
      %p187 = por %p185, %p186
      %s189 = sadd.s32 %s188, 1
      %p192 = scmp.eq.s32.totalorder %s23, 1
      %p193 = scmp.ne.s32.totalorder %s188, %s190
      %p194 = scmp.eq.s32.totalorder %s23, 0
      %p195 = por %p193, %p194
      %p196 = scmp.ne.s32.totalorder %s188, %s190
      %p197 = scmp.eq.s32.totalorder %s28, 1
      %p198 = por %p196, %p197
      %p199 = scmp.ne.s32.totalorder %s190, %s191
      %p200 = scmp.eq.s32.totalorder %s28, 0
      %p201 = por %p199, %p200
      %p202 = scmp.ne.s32.totalorder %s190, %s191
      %p203 = scmp.eq.s32.totalorder %s29, 1
      %p204 = por %p202, %p203
      %p206 = scmp.ne.s32.totalorder %s191, %s205
      %p207 = scmp.eq.s32.totalorder %s29, 0
      %p208 = por %p206, %p207
      %s209 = ssub.s32 %s23, %s30
      %p210 = scmp.eq.s32.totalorder %s209, 0
      %s212 = sadd.s32 %s211, 1
      %s213 = scalar_select %p210, %s211, %s212
      %p216 = pneg %p210
      %p217 = scmp.eq.s32.totalorder %s23, 1
      %p218 = por %p216, %p217
      %p219 = scmp.ne.s32.totalorder %s211, %s214
      %p220 = scmp.eq.s32.totalorder %s23, 0
      %p221 = por %p219, %p220
      %p222 = scmp.ne.s32.totalorder %s211, %s214
      %p223 = scmp.eq.s32.totalorder %s28, 1
      %p224 = por %p222, %p223
      %p225 = scmp.ne.s32.totalorder %s214, %s215
      %p226 = scmp.eq.s32.totalorder %s28, 0
      %p227 = por %p225, %p226
      %p228 = scmp.ne.s32.totalorder %s214, %s215
      %p229 = scmp.eq.s32.totalorder %s29, 1
      %p230 = por %p228, %p229
      %p232 = scmp.ne.s32.totalorder %s215, %s231
      %p233 = scmp.eq.s32.totalorder %s29, 0
      %p234 = por %p232, %p233
      %p235 = scmp.le.s32.totalorder 1, %s23
      %p236 = scmp.lt.s32.totalorder %s23, 3
      %p237 = pnand %p235, %p236
      %p238 = pneg %p237
      // Predicated region
      $region9: #{tpu_custom_call.1} parent=5 // pred_check
        _
      $region10: #{tpu_custom_call.1} parent=5 // pred_check_branch
        %240 = sbr.rel (%p237) target = $region12
      $region11: #{tpu_custom_call.1} parent=5 // pred_region
        %s241 = ssub.s32 %s23, 1
        // Predicated region
        $region13: #{tpu_custom_call.1} parent=11 // pred_check
          %p242 = pneg %p96
        $region14: #{tpu_custom_call.1} parent=11 // pred_check_branch
          %244 = sbr.rel (%p242) target = $region16
        $region15: #{tpu_custom_call.1} parent=11 // pred_region
          %s246 = ssub.s32 2048, 2048
          %247 = vsyncadd [#allocation10], %s246
          %s248 = sshll.u32 [#allocation11], 4
          %s249 = int_to_ptr.vmem [resolvable:$true] %s248
          %254 = dma.hbm_to_vmem [thread:$0]  %s2, 2048, %s249, [#allocation10], 256, 256, 16
        $region16: #{tpu_custom_call.1} parent=11 // pred_fallthru
          _
        // Predicated region
        $region17: #{tpu_custom_call.1} parent=11 // pred_check
          %p255 = pneg %p117
        $region18: #{tpu_custom_call.1} parent=11 // pred_check_branch
          %257 = sbr.rel (%p255) target = $region20
        $region19: #{tpu_custom_call.1} parent=11 // pred_region
          _
        $region20: #{tpu_custom_call.1} parent=11 // pred_fallthru
          _
        // Predicated region
        $region21: #{tpu_custom_call.1} parent=11 // pred_check
          %p258 = pneg %p138
        $region22: #{tpu_custom_call.1} parent=11 // pred_check_branch
          %260 = sbr.rel (%p258) target = $region24
        $region23: #{tpu_custom_call.1} parent=11 // pred_region
          _
        $region24: #{tpu_custom_call.1} parent=11 // pred_fallthru
          _
        // Predicated region
        $region25: #{tpu_custom_call.1} parent=11 // pred_check
          %p261 = pneg %p159
        $region26: #{tpu_custom_call.1} parent=11 // pred_check_branch
          %263 = sbr.rel (%p261) target = $region28
        $region27: #{tpu_custom_call.1} parent=11 // pred_region
          _
        $region28: #{tpu_custom_call.1} parent=11 // pred_fallthru
          _
        // Predicated region
        $region29: #{tpu_custom_call.1} parent=11 // pred_check
          %p264 = pneg %p180
        $region30: #{tpu_custom_call.1} parent=11 // pred_check_branch
          %266 = sbr.rel (%p264) target = $region32
        $region31: #{tpu_custom_call.1} parent=11 // pred_region
          _
        $region32: #{tpu_custom_call.1} parent=11 // pred_fallthru
          _
        // Predicated region
        $region33: #{tpu_custom_call.1} parent=11 // pred_check
          %p267 = pneg %p201
        $region34: #{tpu_custom_call.1} parent=11 // pred_check_branch
          %269 = sbr.rel (%p267) target = $region36
        $region35: #{tpu_custom_call.1} parent=11 // pred_region
          _
        $region36: #{tpu_custom_call.1} parent=11 // pred_fallthru
          _
      $region12: #{tpu_custom_call.1} parent=5 // pred_fallthru
        _
      %p270 = scmp.lt.s32.totalorder %s23, 2
      // Predicated region
      $region37: #{tpu_custom_call.1} parent=5 // pred_check
        %p271 = pneg %p270
      $region38: #{tpu_custom_call.1} parent=5 // pred_check_branch
        %273 = sbr.rel (%p271) target = $region40
      $region39: #{tpu_custom_call.1} parent=5 // pred_region
        // Predicated region
        $region41: #{tpu_custom_call.1} parent=39 // pred_check
          %p274 = pneg %p43
        $region42: #{tpu_custom_call.1} parent=39 // pred_check_branch
          %276 = sbr.rel (%p274) target = $region44
        $region43: #{tpu_custom_call.1} parent=39 // pred_region
          %s277 = sand.u32 %s33, 1
          %s278 = scalar_lea.sflag [#allocation7], %s277
          %s279 = sand.u32 %s33, 1
          %s280 = smul.addr %s279, 8
          %s281 = scalar_lea.vmem [#allocation6], %s280
          %s283 = ssub.s32 128, 128
          %284 = vsyncadd %s278, %s283
          %s285 = smul.addr %s23, 128
          %s286 = scalar_lea.hbm %s0, %s285
          %s288 = sshll.u32 %s281, 4
          %s289 = int_to_ptr.vmem [resolvable:$true] %s288
          %291 = dma.hbm_to_vmem [thread:$0]  %s286, 128, %s289, %s278
        $region44: #{tpu_custom_call.1} parent=39 // pred_fallthru
          _
        // Predicated region
        $region45: #{tpu_custom_call.1} parent=39 // pred_check
          %p292 = pneg %p69
        $region46: #{tpu_custom_call.1} parent=39 // pred_check_branch
          %294 = sbr.rel (%p292) target = $region48
        $region47: #{tpu_custom_call.1} parent=39 // pred_region
          %s295 = sand.u32 %s23, 1
          %s296 = scalar_lea.sflag [#allocation10], %s295
          %s297 = sand.u32 %s59, 1
          %s298 = smul.addr %s297, 16
          %s299 = scalar_lea.vmem [#allocation9], %s298
          %s301 = ssub.s32 256, 256
          %302 = vsyncadd %s296, %s301
          %s303 = smul.addr %s23, 2
          %s304 = smul.addr %s303, 128
          %s305 = scalar_lea.hbm %s1, %s304
          %s307 = sshll.u32 %s299, 4
          %s308 = int_to_ptr.vmem [resolvable:$true] %s307
          %310 = dma.hbm_to_vmem [thread:$0]  %s305, 256, %s308, %s296
        $region48: #{tpu_custom_call.1} parent=39 // pred_fallthru
          _
      $region40: #{tpu_custom_call.1} parent=5 // pred_fallthru
        _
      %p311 = scmp.le.s32.totalorder 1, %s23
      %p312 = scmp.lt.s32.totalorder %s23, 3
      %p313 = pnand %p311, %p312
      %p314 = pneg %p313
      // Predicated region
      $region49: #{tpu_custom_call.1} parent=5 // pred_check
        _
      $region50: #{tpu_custom_call.1} parent=5 // pred_check_branch
        %316 = sbr.rel (%p313) target = $region52
      $region51: #{tpu_custom_call.1} parent=5 // pred_region
        %s317 = ssub.s32 %s23, 1
        %s318 = sand.u32 %s36, 1
        %s319 = scalar_lea.sflag [#allocation7], %s318
        %s320 = sand.u32 %s36, 1
        %s321 = smul.addr %s320, 8
        %s322 = scalar_lea.vmem [#allocation6], %s321
        // Predicated region
        $region53: #{tpu_custom_call.1} parent=51 // pred_check
          %p323 = pneg %p49
        $region54: #{tpu_custom_call.1} parent=51 // pred_check_branch
          %325 = sbr.rel (%p323) target = $region56
        $region55: #{tpu_custom_call.1} parent=51 // pred_region
          %326 = dma.done %s319, 128
        $region56: #{tpu_custom_call.1} parent=51 // pred_fallthru
          _
        %s327 = sand.u32 %s28, 1
        %s328 = scalar_lea.sflag [#allocation10], %s327
        %s329 = sand.u32 %s62, 1
        %s330 = smul.addr %s329, 16
        %s331 = scalar_lea.vmem [#allocation9], %s330
        // Predicated region
        $region57: #{tpu_custom_call.1} parent=51 // pred_check
          %p332 = pneg %p75
        $region58: #{tpu_custom_call.1} parent=51 // pred_check_branch
          %334 = sbr.rel (%p332) target = $region60
        $region59: #{tpu_custom_call.1} parent=51 // pred_region
          %335 = dma.done %s328, 256
        $region60: #{tpu_custom_call.1} parent=51 // pred_fallthru
          _
        // Predicated region
        $region61: #{tpu_custom_call.1} parent=51 // pred_check
          %p336 = pneg %p96
        $region62: #{tpu_custom_call.1} parent=51 // pred_check_branch
          %338 = sbr.rel (%p336) target = $region64
        $region63: #{tpu_custom_call.1} parent=51 // pred_region
          %339 = dma.done [#allocation10], 2048
        $region64: #{tpu_custom_call.1} parent=51 // pred_fallthru
          _
        %s340 = sand.u32 %s36, 1
        %s341 = scalar_lea.sflag [#allocation7], %s340
        %s342 = sand.u32 %s36, 1
        %s343 = smul.addr %s342, 8
        %s344 = scalar_lea.vmem [#allocation6], %s343
        %p345 = pneg %p49
        %p346 = pneg %p46
        %s347 = sand.u32 %s28, 1
        %s348 = scalar_lea.sflag [#allocation10], %s347
        %s349 = sand.u32 %s62, 1
        %s350 = smul.addr %s349, 16
        %s351 = scalar_lea.vmem [#allocation9], %s350
        %p352 = pneg %p75
        %p353 = pneg %p72
        %p354 = pneg %p96
        %p355 = pneg %p93
        %p356 = pneg %p117
        %p357 = pneg %p114
        %p358 = pneg %p138
        %p359 = pneg %p135
        %p360 = pneg %p159
        %p361 = pneg %p156
        %p362 = pneg %p180
        %p363 = pneg %p177
        %p364 = pneg %p201
        %p365 = pneg %p198
        %p366 = pneg %p227
        %p367 = pneg %p224
        %s368 = sand.u32 %s214, 1
        %s369 = scalar_lea.sflag [#allocation8], %s368
        %s370 = sand.u32 %s214, 1
        %s371 = smul.addr %s370, 8
        %s372 = scalar_lea.vmem [#allocation12], %s371
        %v373 = vld [vmem:[%s3] ss:$2 sm:$0x3]
        %s374 = scalar_lea.vmem %s3, 1
        %v375 = vld [vmem:[%s374] ss:$2 sm:$0x3]
        %v376 = vld [vmem:[%s322] sm:$0xff]
        %v377 = vld [vmem:[#allocation11] sm:$0xff]
        %v378 = vld [vmem:[#allocation11 + $0x8] sm:$0xff]
        %v379 = vld [vmem:[#allocation11 + $0x10] sm:$0xff]
        %v380 = vld [vmem:[#allocation11 + $0x18] sm:$0xff]
        %v381 = vld [vmem:[#allocation11 + $0x20] sm:$0xff]
        %v382 = vld [vmem:[#allocation11 + $0x28] sm:$0xff]
        %v383 = vld [vmem:[#allocation11 + $0x30] sm:$0xff]
        %v384 = vld [vmem:[#allocation11 + $0x38] sm:$0xff]
        %v385 = vld [vmem:[#allocation11 + $0x40] sm:$0xff]
        %v386 = vld [vmem:[#allocation11 + $0x48] sm:$0xff]
        %v387 = vld [vmem:[#allocation11 + $0x50] sm:$0xff]
        %v388 = vld [vmem:[#allocation11 + $0x58] sm:$0xff]
        %v389 = vld [vmem:[#allocation11 + $0x60] sm:$0xff]
        %v390 = vld [vmem:[#allocation11 + $0x68] sm:$0xff]
        %v391 = vld [vmem:[#allocation11 + $0x70] sm:$0xff]
        %v392 = vld [vmem:[#allocation11 + $0x78] sm:$0xff]
        %vm393 = vcmask 523264
        %v395 = vsel %vm393, %v376, 0
        %397 = vmatprep.subr.mxu0 0.0
        %398 = vmatpush1.msra.mxu0 0.0
        %399 = vmatprep.subr.mxu0 0.0
        %400 = vmatpush1.msra.mxu0 0.0
        %401 = vmatprep.subr.mxu0 0.0
        %402 = vmatpush1.msra.mxu0 0.0
        %403 = vmatprep.subr.mxu0 0.0
        %404 = vmatpush1.msra.mxu0 0.0
        %405 = vmatprep.subr.mxu0 0.0
        %406 = vmatpush1.msra.mxu0 0.0
        %407 = vmatprep.subr.mxu0 0.0
        %408 = vmatpush1.msra.mxu0 0.0
        %409 = vmatprep.subr.mxu0 0.0
        %410 = vmatpush1.msra.mxu0 0.0
        %411 = vmatprep.subr.mxu0 0.0
        %412 = vmatpush1.msra.mxu0 0.0
        %413 = vmatprep.subr.mxu0 %v392
        %414 = vmatpush1.msra.mxu0 %v391
        %415 = vmatprep.subr.mxu0 %v390
        %416 = vmatpush1.msra.mxu0 %v389
        %417 = vmatprep.subr.mxu0 %v388
        %418 = vmatpush1.msra.mxu0 %v387
        %419 = vmatprep.subr.mxu0 %v386
        %420 = vmatpush1.msra.mxu0 %v385
        %421 = vmatprep.subr.mxu0 %v384
        %422 = vmatpush1.msra.mxu0 %v383
        %423 = vmatprep.subr.mxu0 %v382
        %424 = vmatpush1.msra.mxu0 %v381
        %425 = vmatprep.subr.mxu0 %v380
        %426 = vmatpush1.msra.mxu0 %v379
        %427 = vmatprep.subr.mxu0 %v378
        %428 = vmatpush1.msra.mxu0 %v377
        %429 = vmatprep.subr.mxu0 0.0
        %430 = vmatpush2.msra.mxu0 0.0
        %431 = vmatprep.subr.mxu0 0.0
        %432 = vmatpush2.msra.mxu0 0.0
        %433 = vmatprep.subr.mxu0 0.0
        %434 = vmatpush2.msra.mxu0 0.0
        %435 = vmatprep.subr.mxu0 0.0
        %436 = vmatpush2.msra.mxu0 0.0
        %437 = vmatprep.subr.mxu0 0.0
        %438 = vmatpush2.msra.mxu0 0.0
        %439 = vmatprep.subr.mxu0 0.0
        %440 = vmatpush2.msra.mxu0 0.0
        %441 = vmatprep.subr.mxu0 0.0
        %442 = vmatpush2.msra.mxu0 0.0
        %443 = vmatprep.subr.mxu0 0.0
        %444 = vmatpush2.msra.mxu0 0.0
        %445 = vmatprep.subr.mxu0 0.0
        %446 = vmatpush2.msra.mxu0 0.0
        %447 = vmatprep.subr.mxu0 0.0
        %448 = vmatpush2.msra.mxu0 0.0
        %449 = vmatprep.subr.mxu0 0.0
        %450 = vmatpush2.msra.mxu0 0.0
        %451 = vmatprep.subr.mxu0 0.0
        %452 = vmatpush2.msra.mxu0 0.0
        %453 = vmatprep.subr.mxu0 0.0
        %454 = vmatpush2.msra.mxu0 0.0
        %455 = vmatprep.subr.mxu0 0.0
        %456 = vmatpush2.msra.mxu0 0.0
        %457 = vmatprep.subr.mxu0 0.0
        %458 = vmatpush2.msra.mxu0 0.0
        %459 = vmatprep.subr.mxu0 0.0
        %460 = vmatpush2.msra.mxu0 0.0
        %461 = vmatprep.mubr.f32.mxu0 0.0
        %462 = vmatmul.mubr.f32.gmra.mxu0 %v395
        %v463 = vpop.f32.mrf.mxu0
        %v464 = vadd.f32 0.0, %v463
        %v465 = vpop.f32.mrf.mxu0
        %v466 = vadd.f32 0.0, %v465
        %467 = vdwg.mxu0
        %468 = vst [vmem:[#allocation2] sm:$0xff] 0.0
        %469 = vst [vmem:[#allocation2 + $0x20] sm:$0xff] 0.0
        %470 = vst [vmem:[#allocation2 + $0x18] sm:$0xff] 0.0
        %471 = vst [vmem:[#allocation2 + $0x38] sm:$0xff] 0.0
        %472 = vst [vmem:[#allocation2 + $0x8] sm:$0xff] %v464
        %473 = vst [vmem:[#allocation2 + $0x10] sm:$0xff] %v466
        %v474 = vld [vmem:[%s331] sm:$0xff]
        %v475 = vld [vmem:[%s331 + $0x8] sm:$0xff]
        %476 = vst [vmem:[#allocation2 + $0x28] sm:$0xff] %v474
        %477 = vst [vmem:[#allocation2 + $0x30] sm:$0xff] %v475
        %v478 = vld [vmem:[#allocation2] sm:$0xff]
        %v479 = vld [vmem:[#allocation2 + $0x8] sm:$0xff]
        %v480 = vld [vmem:[#allocation2 + $0x10] sm:$0xff]
        %v481 = vld [vmem:[#allocation2 + $0x20] sm:$0xff]
        %v482 = vld [vmem:[#allocation2 + $0x28] sm:$0xff]
        %v483 = vld [vmem:[#allocation2 + $0x30] sm:$0xff]
        %v485 = vlaneseq
        %v486 = vshrl.u32 %v485, 7
        %v487 = vsub.s32 0, %v486
        %v488 = vrot.slane %v373, %v487
        %v489 = vlaneseq
        %v490 = vshrl.u32 %v489, 7
        %v491 = vsub.s32 1, %v490
        %v492 = vrot.slane %v373, %v491
        %493 = vrot.lane.b32.xlu0 %v488, 111
        %v494 = vpop.permute.xlu0 %493
        %495 = vrot.lane.b32.xlu0 %v492, 111
        %v496 = vpop.permute.xlu0 %495
        %vm497 = vcmask 908288
        %v498 = vsel %vm497, %v494, %v496
        %v502 = vmul.f32 %v478, %v494
        %v503 = vmul.f32 %v479, %v498
        %v504 = vmul.f32 %v480, %v496
        %v505 = vmul.f32 %v481, %v494
        %v506 = vmul.f32 %v482, %v498
        %v507 = vmul.f32 %v483, %v496
        %514 = vrot.lane.b32.xlu0 %v502, 17
        %v515 = vpop.permute.xlu0 %514
        %516 = vrot.lane.b32.xlu0 %v503, 17
        %v517 = vpop.permute.xlu0 %516
        %518 = vrot.lane.b32.xlu0 %v504, 17
        %v519 = vpop.permute.xlu0 %518
        %520 = vrot.lane.b32.xlu0 %v505, 17
        %v521 = vpop.permute.xlu0 %520
        %522 = vrot.lane.b32.xlu0 %v506, 17
        %v523 = vpop.permute.xlu0 %522
        %524 = vrot.lane.b32.xlu0 %v507, 17
        %v525 = vpop.permute.xlu0 %524
        %vm526 = vcmask 138240
        %v527 = vsel %vm526, %v515, %v517
        %v528 = vsel %vm526, %v517, %v519
        %v529 = vsel %vm526, %v521, %v523
        %v530 = vsel %vm526, %v523, %v525
        %535 = vst [vmem:[#allocation4] sm:$0xff] %v527
        %536 = vst [vmem:[#allocation4 + $0x8] sm:$0xff] %v528
        %537 = vst [vmem:[#allocation4 + $0x10] sm:$0xff] %v529
        %538 = vst [vmem:[#allocation4 + $0x18] sm:$0xff] %v530
        %v539 = vld [vmem:[#allocation2] sm:$0xff]
        %v540 = vld [vmem:[#allocation2 + $0x8] sm:$0xff]
        %v541 = vld [vmem:[#allocation2 + $0x10] sm:$0xff]
        %v542 = vld [vmem:[#allocation2 + $0x20] sm:$0xff]
        %v543 = vld [vmem:[#allocation2 + $0x28] sm:$0xff]
        %v544 = vld [vmem:[#allocation2 + $0x30] sm:$0xff]
        %551 = vrot.lane.b32.xlu0 %v539, 16
        %v552 = vpop.permute.xlu0 %551
        %553 = vrot.lane.b32.xlu0 %v540, 16
        %v554 = vpop.permute.xlu0 %553
        %555 = vrot.lane.b32.xlu0 %v541, 16
        %v556 = vpop.permute.xlu0 %555
        %557 = vrot.lane.b32.xlu0 %v542, 16
        %v558 = vpop.permute.xlu0 %557
        %559 = vrot.lane.b32.xlu0 %v543, 16
        %v560 = vpop.permute.xlu0 %559
        %561 = vrot.lane.b32.xlu0 %v544, 16
        %v562 = vpop.permute.xlu0 %561
        %vm563 = vcmask 130048
        %v564 = vsel %vm563, %v552, %v554
        %v565 = vsel %vm563, %v554, %v556
        %v566 = vsel %vm563, %v558, %v560
        %v567 = vsel %vm563, %v560, %v562
        %572 = vst [vmem:[#allocation4 + $0x20] sm:$0xff] %v564
        %573 = vst [vmem:[#allocation4 + $0x28] sm:$0xff] %v565
        %574 = vst [vmem:[#allocation4 + $0x30] sm:$0xff] %v566
        %575 = vst [vmem:[#allocation4 + $0x38] sm:$0xff] %v567
        %v576 = vld [vmem:[#allocation2] sm:$0xff]
        %v577 = vld [vmem:[#allocation2 + $0x8] sm:$0xff]
        %v578 = vld [vmem:[#allocation2 + $0x10] sm:$0xff]
        %v579 = vld [vmem:[#allocation2 + $0x20] sm:$0xff]
        %v580 = vld [vmem:[#allocation2 + $0x28] sm:$0xff]
        %v581 = vld [vmem:[#allocation2 + $0x30] sm:$0xff]
        %v583 = vlaneseq
        %v584 = vshrl.u32 %v583, 7
        %v585 = vsub.s32 0, %v584
        %v586 = vrot.slane %v375, %v585
        %v587 = vlaneseq
        %v588 = vshrl.u32 %v587, 7
        %v589 = vsub.s32 1, %v588
        %v590 = vrot.slane %v375, %v589
        %591 = vrot.lane.b32.xlu0 %v586, 113
        %v592 = vpop.permute.xlu0 %591
        %593 = vrot.lane.b32.xlu0 %v590, 113
        %v594 = vpop.permute.xlu0 %593
        %vm595 = vcmask 924672
        %v596 = vsel %vm595, %v592, %v594
        %v600 = vmul.f32 %v576, %v592
        %v601 = vmul.f32 %v577, %v596
        %v602 = vmul.f32 %v578, %v594
        %v603 = vmul.f32 %v579, %v592
        %v604 = vmul.f32 %v580, %v596
        %v605 = vmul.f32 %v581, %v594
        %612 = vrot.lane.b32.xlu0 %v600, 15
        %v613 = vpop.permute.xlu0 %612
        %614 = vrot.lane.b32.xlu0 %v601, 15
        %v615 = vpop.permute.xlu0 %614
        %616 = vrot.lane.b32.xlu0 %v602, 15
        %v617 = vpop.permute.xlu0 %616
        %618 = vrot.lane.b32.xlu0 %v603, 15
        %v619 = vpop.permute.xlu0 %618
        %620 = vrot.lane.b32.xlu0 %v604, 15
        %v621 = vpop.permute.xlu0 %620
        %622 = vrot.lane.b32.xlu0 %v605, 15
        %v623 = vpop.permute.xlu0 %622
        %vm624 = vcmask 121856
        %v625 = vsel %vm624, %v613, %v615
        %v626 = vsel %vm624, %v615, %v617
        %v627 = vsel %vm624, %v619, %v621
        %v628 = vsel %vm624, %v621, %v623
        %633 = vst [vmem:[#allocation4 + $0x40] sm:$0xff] %v625
        %634 = vst [vmem:[#allocation4 + $0x48] sm:$0xff] %v626
        %635 = vst [vmem:[#allocation4 + $0x50] sm:$0xff] %v627
        %636 = vst [vmem:[#allocation4 + $0x58] sm:$0xff] %v628
        %v637 = vld [vmem:[#allocation2] sm:$0xff]
        %v638 = vld [vmem:[#allocation2 + $0x8] sm:$0xff]
        %v639 = vld [vmem:[#allocation2 + $0x10] sm:$0xff]
        %v640 = vld [vmem:[#allocation2 + $0x20] sm:$0xff]
        %v641 = vld [vmem:[#allocation2 + $0x28] sm:$0xff]
        %v642 = vld [vmem:[#allocation2 + $0x30] sm:$0xff]
        %643 = vrot.lane.b32.xlu0 %v488, 127
        %v644 = vpop.permute.xlu0 %643
        %645 = vrot.lane.b32.xlu0 %v492, 127
        %v646 = vpop.permute.xlu0 %645
        %vm647 = vcmask 1039360
        %v648 = vsel %vm647, %v644, %v646
        %v652 = vmul.f32 %v637, %v644
        %v653 = vmul.f32 %v638, %v648
        %v654 = vmul.f32 %v639, %v646
        %v655 = vmul.f32 %v640, %v644
        %v656 = vmul.f32 %v641, %v648
        %v657 = vmul.f32 %v642, %v646
        %664 = vrot.lane.b32.xlu0 %v652, 1
        %v665 = vpop.permute.xlu0 %664
        %666 = vrot.lane.b32.xlu0 %v653, 1
        %v667 = vpop.permute.xlu0 %666
        %668 = vrot.lane.b32.xlu0 %v654, 1
        %v669 = vpop.permute.xlu0 %668
        %670 = vrot.lane.b32.xlu0 %v655, 1
        %v671 = vpop.permute.xlu0 %670
        %672 = vrot.lane.b32.xlu0 %v656, 1
        %v673 = vpop.permute.xlu0 %672
        %674 = vrot.lane.b32.xlu0 %v657, 1
        %v675 = vpop.permute.xlu0 %674
        %vm676 = vcmask 7168
        %v677 = vsel %vm676, %v665, %v667
        %v678 = vsel %vm676, %v667, %v669
        %v679 = vsel %vm676, %v671, %v673
        %v680 = vsel %vm676, %v673, %v675
        %685 = vst [vmem:[#allocation4 + $0x60] sm:$0xff] %v677
        %686 = vst [vmem:[#allocation4 + $0x68] sm:$0xff] %v678
        %687 = vst [vmem:[#allocation4 + $0x70] sm:$0xff] %v679
        %688 = vst [vmem:[#allocation4 + $0x78] sm:$0xff] %v680
        %v689 = vld [vmem:[#allocation2 + $0x8] sm:$0xff]
        %v690 = vld [vmem:[#allocation2 + $0x10] sm:$0xff]
        %v691 = vld [vmem:[#allocation2 + $0x28] sm:$0xff]
        %v692 = vld [vmem:[#allocation2 + $0x30] sm:$0xff]
        %693 = vst [vmem:[#allocation4 + $0x80] sm:$0xff] %v689
        %694 = vst [vmem:[#allocation4 + $0x88] sm:$0xff] %v690
        %695 = vst [vmem:[#allocation4 + $0x90] sm:$0xff] %v691
        %696 = vst [vmem:[#allocation4 + $0x98] sm:$0xff] %v692
        %v697 = vld [vmem:[#allocation2 + $0x8] sm:$0xff]
        %v698 = vld [vmem:[#allocation2 + $0x10] sm:$0xff]
        %v699 = vld [vmem:[#allocation2 + $0x18] sm:$0xff]
        %v700 = vld [vmem:[#allocation2 + $0x28] sm:$0xff]
        %v701 = vld [vmem:[#allocation2 + $0x30] sm:$0xff]
        %v702 = vld [vmem:[#allocation2 + $0x38] sm:$0xff]
        %703 = vrot.lane.b32.xlu0 %v586, 1
        %v704 = vpop.permute.xlu0 %703
        %705 = vrot.lane.b32.xlu0 %v590, 1
        %v706 = vpop.permute.xlu0 %705
        %v707 = vsel %vm676, %v704, %v706
        %v711 = vmul.f32 %v697, %v704
        %v712 = vmul.f32 %v698, %v707
        %v713 = vmul.f32 %v699, %v706
        %v714 = vmul.f32 %v700, %v704
        %v715 = vmul.f32 %v701, %v707
        %v716 = vmul.f32 %v702, %v706
        %723 = vrot.lane.b32.xlu0 %v711, 127
        %v724 = vpop.permute.xlu0 %723
        %725 = vrot.lane.b32.xlu0 %v712, 127
        %v726 = vpop.permute.xlu0 %725
        %727 = vrot.lane.b32.xlu0 %v713, 127
        %v728 = vpop.permute.xlu0 %727
        %729 = vrot.lane.b32.xlu0 %v714, 127
        %v730 = vpop.permute.xlu0 %729
        %731 = vrot.lane.b32.xlu0 %v715, 127
        %v732 = vpop.permute.xlu0 %731
        %733 = vrot.lane.b32.xlu0 %v716, 127
        %v734 = vpop.permute.xlu0 %733
        %v735 = vsel %vm647, %v724, %v726
        %v736 = vsel %vm647, %v726, %v728
        %v737 = vsel %vm647, %v730, %v732
        %v738 = vsel %vm647, %v732, %v734
        %743 = vst [vmem:[#allocation4 + $0xa0] sm:$0xff] %v735
        %744 = vst [vmem:[#allocation4 + $0xa8] sm:$0xff] %v736
        %745 = vst [vmem:[#allocation4 + $0xb0] sm:$0xff] %v737
        %746 = vst [vmem:[#allocation4 + $0xb8] sm:$0xff] %v738
        %v747 = vld [vmem:[#allocation2 + $0x8] sm:$0xff]
        %v748 = vld [vmem:[#allocation2 + $0x10] sm:$0xff]
        %v749 = vld [vmem:[#allocation2 + $0x18] sm:$0xff]
        %v750 = vld [vmem:[#allocation2 + $0x28] sm:$0xff]
        %v751 = vld [vmem:[#allocation2 + $0x30] sm:$0xff]
        %v752 = vld [vmem:[#allocation2 + $0x38] sm:$0xff]
        %753 = vrot.lane.b32.xlu0 %v488, 15
        %v754 = vpop.permute.xlu0 %753
        %755 = vrot.lane.b32.xlu0 %v492, 15
        %v756 = vpop.permute.xlu0 %755
        %v757 = vsel %vm624, %v754, %v756
        %v761 = vmul.f32 %v747, %v754
        %v762 = vmul.f32 %v748, %v757
        %v763 = vmul.f32 %v749, %v756
        %v764 = vmul.f32 %v750, %v754
        %v765 = vmul.f32 %v751, %v757
        %v766 = vmul.f32 %v752, %v756
        %773 = vrot.lane.b32.xlu0 %v761, 113
        %v774 = vpop.permute.xlu0 %773
        %775 = vrot.lane.b32.xlu0 %v762, 113
        %v776 = vpop.permute.xlu0 %775
        %777 = vrot.lane.b32.xlu0 %v763, 113
        %v778 = vpop.permute.xlu0 %777
        %779 = vrot.lane.b32.xlu0 %v764, 113
        %v780 = vpop.permute.xlu0 %779
        %781 = vrot.lane.b32.xlu0 %v765, 113
        %v782 = vpop.permute.xlu0 %781
        %783 = vrot.lane.b32.xlu0 %v766, 113
        %v784 = vpop.permute.xlu0 %783
        %v785 = vsel %vm595, %v774, %v776
        %v786 = vsel %vm595, %v776, %v778
        %v787 = vsel %vm595, %v780, %v782
        %v788 = vsel %vm595, %v782, %v784
        %793 = vst [vmem:[#allocation4 + $0xc0] sm:$0xff] %v785
        %794 = vst [vmem:[#allocation4 + $0xc8] sm:$0xff] %v786
        %795 = vst [vmem:[#allocation4 + $0xd0] sm:$0xff] %v787
        %796 = vst [vmem:[#allocation4 + $0xd8] sm:$0xff] %v788
        %v797 = vld [vmem:[#allocation2 + $0x8] sm:$0xff]
        %v798 = vld [vmem:[#allocation2 + $0x10] sm:$0xff]
        %v799 = vld [vmem:[#allocation2 + $0x18] sm:$0xff]
        %v800 = vld [vmem:[#allocation2 + $0x28] sm:$0xff]
        %v801 = vld [vmem:[#allocation2 + $0x30] sm:$0xff]
        %v802 = vld [vmem:[#allocation2 + $0x38] sm:$0xff]
        %809 = vrot.lane.b32.xlu0 %v797, 112
        %v810 = vpop.permute.xlu0 %809
        %811 = vrot.lane.b32.xlu0 %v798, 112
        %v812 = vpop.permute.xlu0 %811
        %813 = vrot.lane.b32.xlu0 %v799, 112
        %v814 = vpop.permute.xlu0 %813
        %815 = vrot.lane.b32.xlu0 %v800, 112
        %v816 = vpop.permute.xlu0 %815
        %817 = vrot.lane.b32.xlu0 %v801, 112
        %v818 = vpop.permute.xlu0 %817
        %819 = vrot.lane.b32.xlu0 %v802, 112
        %v820 = vpop.permute.xlu0 %819
        %vm821 = vcmask 916480
        %v822 = vsel %vm821, %v810, %v812
        %v823 = vsel %vm821, %v812, %v814
        %v824 = vsel %vm821, %v816, %v818
        %v825 = vsel %vm821, %v818, %v820
        %830 = vst [vmem:[#allocation4 + $0xe0] sm:$0xff] %v822
        %831 = vst [vmem:[#allocation4 + $0xe8] sm:$0xff] %v823
        %832 = vst [vmem:[#allocation4 + $0xf0] sm:$0xff] %v824
        %833 = vst [vmem:[#allocation4 + $0xf8] sm:$0xff] %v825
        %v834 = vld [vmem:[#allocation2 + $0x8] sm:$0xff]
        %v835 = vld [vmem:[#allocation2 + $0x10] sm:$0xff]
        %v836 = vld [vmem:[#allocation2 + $0x18] sm:$0xff]
        %v837 = vld [vmem:[#allocation2 + $0x28] sm:$0xff]
        %v838 = vld [vmem:[#allocation2 + $0x30] sm:$0xff]
        %v839 = vld [vmem:[#allocation2 + $0x38] sm:$0xff]
        %840 = vrot.lane.b32.xlu0 %v586, 17
        %v841 = vpop.permute.xlu0 %840
        %842 = vrot.lane.b32.xlu0 %v590, 17
        %v843 = vpop.permute.xlu0 %842
        %v844 = vsel %vm526, %v841, %v843
        %v848 = vmul.f32 %v834, %v841
        %v849 = vmul.f32 %v835, %v844
        %v850 = vmul.f32 %v836, %v843
        %v851 = vmul.f32 %v837, %v841
        %v852 = vmul.f32 %v838, %v844
        %v853 = vmul.f32 %v839, %v843
        %860 = vrot.lane.b32.xlu0 %v848, 111
        %v861 = vpop.permute.xlu0 %860
        %862 = vrot.lane.b32.xlu0 %v849, 111
        %v863 = vpop.permute.xlu0 %862
        %864 = vrot.lane.b32.xlu0 %v850, 111
        %v865 = vpop.permute.xlu0 %864
        %866 = vrot.lane.b32.xlu0 %v851, 111
        %v867 = vpop.permute.xlu0 %866
        %868 = vrot.lane.b32.xlu0 %v852, 111
        %v869 = vpop.permute.xlu0 %868
        %870 = vrot.lane.b32.xlu0 %v853, 111
        %v871 = vpop.permute.xlu0 %870
        %v872 = vsel %vm497, %v861, %v863
        %v873 = vsel %vm497, %v863, %v865
        %v874 = vsel %vm497, %v867, %v869
        %v875 = vsel %vm497, %v869, %v871
        %880 = vst [vmem:[#allocation4 + $0x100] sm:$0xff] %v872
        %881 = vst [vmem:[#allocation4 + $0x108] sm:$0xff] %v873
        %882 = vst [vmem:[#allocation4 + $0x110] sm:$0xff] %v874
        %883 = vst [vmem:[#allocation4 + $0x118] sm:$0xff] %v875
        %v884 = vld [vmem:[%s4] sm:$0xff]
        %v885 = vld [vmem:[%s4 + $0x8] sm:$0xff]
        %v886 = vld [vmem:[#allocation4] sm:$0xff]
        %v887 = vld [vmem:[#allocation4 + $0x8] sm:$0xff]
        %v888 = vld [vmem:[#allocation4 + $0x10] sm:$0xff]
        %v889 = vld [vmem:[#allocation4 + $0x18] sm:$0xff]
        %v890 = vld [vmem:[#allocation4 + $0x20] sm:$0xff]
        %v891 = vld [vmem:[#allocation4 + $0x28] sm:$0xff]
        %v892 = vld [vmem:[#allocation4 + $0x30] sm:$0xff]
        %v893 = vld [vmem:[#allocation4 + $0x38] sm:$0xff]
        %v894 = vld [vmem:[#allocation4 + $0x40] sm:$0xff]
        %v895 = vld [vmem:[#allocation4 + $0x48] sm:$0xff]
        %v896 = vld [vmem:[#allocation4 + $0x50] sm:$0xff]
        %v897 = vld [vmem:[#allocation4 + $0x58] sm:$0xff]
        %v898 = vld [vmem:[#allocation4 + $0x60] sm:$0xff]
        %v899 = vld [vmem:[#allocation4 + $0x68] sm:$0xff]
        %v900 = vld [vmem:[#allocation4 + $0x70] sm:$0xff]
        %v901 = vld [vmem:[#allocation4 + $0x78] sm:$0xff]
        %v902 = vld [vmem:[#allocation4 + $0x80] sm:$0xff]
        %v903 = vld [vmem:[#allocation4 + $0x88] sm:$0xff]
        %v904 = vld [vmem:[#allocation4 + $0x90] sm:$0xff]
        %v905 = vld [vmem:[#allocation4 + $0x98] sm:$0xff]
        %v906 = vld [vmem:[#allocation4 + $0xa0] sm:$0xff]
        %v907 = vld [vmem:[#allocation4 + $0xa8] sm:$0xff]
        %v908 = vld [vmem:[#allocation4 + $0xb0] sm:$0xff]
        %v909 = vld [vmem:[#allocation4 + $0xb8] sm:$0xff]
        %v910 = vld [vmem:[#allocation4 + $0xc0] sm:$0xff]
        %v911 = vld [vmem:[#allocation4 + $0xc8] sm:$0xff]
        %v912 = vld [vmem:[#allocation4 + $0xd0] sm:$0xff]
        %v913 = vld [vmem:[#allocation4 + $0xd8] sm:$0xff]
        %v914 = vld [vmem:[#allocation4 + $0xe0] sm:$0xff]
        %v915 = vld [vmem:[#allocation4 + $0xe8] sm:$0xff]
        %v916 = vld [vmem:[#allocation4 + $0xf0] sm:$0xff]
        %v917 = vld [vmem:[#allocation4 + $0xf8] sm:$0xff]
        %v918 = vld [vmem:[#allocation4 + $0x100] sm:$0xff]
        %v919 = vld [vmem:[#allocation4 + $0x108] sm:$0xff]
        %v920 = vld [vmem:[#allocation4 + $0x110] sm:$0xff]
        %v921 = vld [vmem:[#allocation4 + $0x118] sm:$0xff]
        %v922 = vld [vmem:[%s5] sm:$0xff]
        %924 = vset.pattern.permute.xlu0 0
        %925 = vperm.xlu0 %924, %v922
        %v926 = vpop.permute.xlu0 %925
        %v929 = vsel %vm563, %v885, 0
        %931 = vmatprep.subr.mxu0 %v917
        %932 = vmatpush1.msra.mxu0 %v916
        %933 = vmatprep.subr.mxu0 %v915
        %934 = vmatpush1.msra.mxu0 %v914
        %935 = vmatprep.subr.mxu0 %v913
        %936 = vmatpush1.msra.mxu0 %v912
        %937 = vmatprep.subr.mxu0 %v911
        %938 = vmatpush1.msra.mxu0 %v910
        %939 = vmatprep.subr.mxu0 %v909
        %940 = vmatpush1.msra.mxu0 %v908
        %941 = vmatprep.subr.mxu0 %v907
        %942 = vmatpush1.msra.mxu0 %v906
        %943 = vmatprep.subr.mxu0 %v905
        %944 = vmatpush1.msra.mxu0 %v904
        %945 = vmatprep.subr.mxu0 %v903
        %946 = vmatpush1.msra.mxu0 %v902
        %947 = vmatprep.subr.mxu0 %v901
        %948 = vmatpush1.msra.mxu0 %v900
        %949 = vmatprep.subr.mxu0 %v899
        %950 = vmatpush1.msra.mxu0 %v898
        %951 = vmatprep.subr.mxu0 %v897
        %952 = vmatpush1.msra.mxu0 %v896
        %953 = vmatprep.subr.mxu0 %v895
        %954 = vmatpush1.msra.mxu0 %v894
        %955 = vmatprep.subr.mxu0 %v893
        %956 = vmatpush1.msra.mxu0 %v892
        %957 = vmatprep.subr.mxu0 %v891
        %958 = vmatpush1.msra.mxu0 %v890
        %959 = vmatprep.subr.mxu0 %v889
        %960 = vmatpush1.msra.mxu0 %v888
        %961 = vmatprep.subr.mxu0 %v887
        %962 = vmatpush1.msra.mxu0 %v886
        %963 = vmatprep.subr.mxu0 0.0
        %964 = vmatpush2.msra.mxu0 0.0
        %965 = vmatprep.subr.mxu0 0.0
        %966 = vmatpush2.msra.mxu0 0.0
        %967 = vmatprep.subr.mxu0 0.0
        %968 = vmatpush2.msra.mxu0 0.0
        %969 = vmatprep.subr.mxu0 0.0
        %970 = vmatpush2.msra.mxu0 0.0
        %971 = vmatprep.subr.mxu0 0.0
        %972 = vmatpush2.msra.mxu0 0.0
        %973 = vmatprep.subr.mxu0 0.0
        %974 = vmatpush2.msra.mxu0 0.0
        %975 = vmatprep.subr.mxu0 0.0
        %976 = vmatpush2.msra.mxu0 0.0
        %977 = vmatprep.subr.mxu0 0.0
        %978 = vmatpush2.msra.mxu0 0.0
        %979 = vmatprep.subr.mxu0 0.0
        %980 = vmatpush2.msra.mxu0 0.0
        %981 = vmatprep.subr.mxu0 0.0
        %982 = vmatpush2.msra.mxu0 0.0
        %983 = vmatprep.subr.mxu0 0.0
        %984 = vmatpush2.msra.mxu0 0.0
        %985 = vmatprep.subr.mxu0 0.0
        %986 = vmatpush2.msra.mxu0 0.0
        %987 = vmatprep.subr.mxu0 0.0
        %988 = vmatpush2.msra.mxu0 0.0
        %989 = vmatprep.subr.mxu0 0.0
        %990 = vmatpush2.msra.mxu0 0.0
        %991 = vmatprep.subr.mxu0 %v921
        %992 = vmatpush2.msra.mxu0 %v920
        %993 = vmatprep.subr.mxu0 %v919
        %994 = vmatpush2.msra.mxu0 %v918
        %995 = vmatprep.mubr.f32.mxu0 %v929
        %996 = vmatmul.mubr.f32.gmra.mxu0 %v884
        %v997 = vpop.f32.mrf.mxu0
        %v998 = vadd.f32 %v926, %v997
        %v999 = vpop.f32.mrf.mxu0
        %v1000 = vadd.f32 %v926, %v999
        %1001 = vdwg.mxu0
        %v1002 = vmax.f32 %v998, 0.0
        %v1003 = vmax.f32 %v1000, 0.0
        %1004 = vst [vmem:[#allocation3] sm:$0xff] 0.0
        %1005 = vst [vmem:[#allocation3 + $0x8] sm:$0xff] 0.0
        %1006 = vst [vmem:[#allocation3 + $0x10] sm:$0xff] 0.0
        %1007 = vst [vmem:[#allocation3 + $0x18] sm:$0xff] 0.0
        %1008 = vst [vmem:[#allocation3 + $0x8] sm:$0xf] %v1002
        %1009 = vst [vmem:[#allocation3 + $0x10] sm:$0xf] %v1003
        %v1010 = vld [vmem:[#allocation3] sm:$0xff]
        %v1011 = vld [vmem:[#allocation3 + $0x8] sm:$0xff]
        %v1012 = vld [vmem:[#allocation3 + $0x10] sm:$0xff]
        %v1013 = vmul.f32 %v1010, %v494
        %v1014 = vmul.f32 %v1011, %v498
        %v1015 = vmul.f32 %v1012, %v496
        %1019 = vrot.lane.b32.xlu0 %v1013, 17
        %v1020 = vpop.permute.xlu0 %1019
        %1021 = vrot.lane.b32.xlu0 %v1014, 17
        %v1022 = vpop.permute.xlu0 %1021
        %1023 = vrot.lane.b32.xlu0 %v1015, 17
        %v1024 = vpop.permute.xlu0 %1023
        %v1025 = vsel %vm526, %v1020, %v1022
        %v1026 = vsel %vm526, %v1022, %v1024
        %1029 = vst [vmem:[#allocation5] sm:$0xff] %v1025
        %1030 = vst [vmem:[#allocation5 + $0x8] sm:$0xff] %v1026
        %v1031 = vld [vmem:[#allocation3] sm:$0xff]
        %v1032 = vld [vmem:[#allocation3 + $0x8] sm:$0xff]
        %v1033 = vld [vmem:[#allocation3 + $0x10] sm:$0xff]
        %1037 = vrot.lane.b32.xlu0 %v1031, 16
        %v1038 = vpop.permute.xlu0 %1037
        %1039 = vrot.lane.b32.xlu0 %v1032, 16
        %v1040 = vpop.permute.xlu0 %1039
        %1041 = vrot.lane.b32.xlu0 %v1033, 16
        %v1042 = vpop.permute.xlu0 %1041
        %v1043 = vsel %vm563, %v1038, %v1040
        %v1044 = vsel %vm563, %v1040, %v1042
        %1047 = vst [vmem:[#allocation5 + $0x10] sm:$0xff] %v1043
        %1048 = vst [vmem:[#allocation5 + $0x18] sm:$0xff] %v1044
        %v1049 = vld [vmem:[#allocation3] sm:$0xff]
        %v1050 = vld [vmem:[#allocation3 + $0x8] sm:$0xff]
        %v1051 = vld [vmem:[#allocation3 + $0x10] sm:$0xff]
        %v1052 = vmul.f32 %v1049, %v592
        %v1053 = vmul.f32 %v1050, %v596
        %v1054 = vmul.f32 %v1051, %v594
        %1058 = vrot.lane.b32.xlu0 %v1052, 15
        %v1059 = vpop.permute.xlu0 %1058
        %1060 = vrot.lane.b32.xlu0 %v1053, 15
        %v1061 = vpop.permute.xlu0 %1060
        %1062 = vrot.lane.b32.xlu0 %v1054, 15
        %v1063 = vpop.permute.xlu0 %1062
        %v1064 = vsel %vm624, %v1059, %v1061
        %v1065 = vsel %vm624, %v1061, %v1063
        %1068 = vst [vmem:[#allocation5 + $0x20] sm:$0xff] %v1064
        %1069 = vst [vmem:[#allocation5 + $0x28] sm:$0xff] %v1065
        %v1070 = vld [vmem:[#allocation3] sm:$0xff]
        %v1071 = vld [vmem:[#allocation3 + $0x8] sm:$0xff]
        %v1072 = vld [vmem:[#allocation3 + $0x10] sm:$0xff]
        %v1073 = vmul.f32 %v1070, %v644
        %v1074 = vmul.f32 %v1071, %v648
        %v1075 = vmul.f32 %v1072, %v646
        %1079 = vrot.lane.b32.xlu0 %v1073, 1
        %v1080 = vpop.permute.xlu0 %1079
        %1081 = vrot.lane.b32.xlu0 %v1074, 1
        %v1082 = vpop.permute.xlu0 %1081
        %1083 = vrot.lane.b32.xlu0 %v1075, 1
        %v1084 = vpop.permute.xlu0 %1083
        %v1085 = vsel %vm676, %v1080, %v1082
        %v1086 = vsel %vm676, %v1082, %v1084
        %1089 = vst [vmem:[#allocation5 + $0x30] sm:$0xff] %v1085
        %1090 = vst [vmem:[#allocation5 + $0x38] sm:$0xff] %v1086
        %v1091 = vld [vmem:[#allocation3 + $0x8] sm:$0xff]
        %v1092 = vld [vmem:[#allocation3 + $0x10] sm:$0xff]
        %1093 = vst [vmem:[#allocation5 + $0x40] sm:$0xff] %v1091
        %1094 = vst [vmem:[#allocation5 + $0x48] sm:$0xff] %v1092
        %v1095 = vld [vmem:[#allocation3 + $0x8] sm:$0xff]
        %v1096 = vld [vmem:[#allocation3 + $0x10] sm:$0xff]
        %v1097 = vld [vmem:[#allocation3 + $0x18] sm:$0xff]
        %v1098 = vmul.f32 %v1095, %v704
        %v1099 = vmul.f32 %v1096, %v707
        %v1100 = vmul.f32 %v1097, %v706
        %1104 = vrot.lane.b32.xlu0 %v1098, 127
        %v1105 = vpop.permute.xlu0 %1104
        %1106 = vrot.lane.b32.xlu0 %v1099, 127
        %v1107 = vpop.permute.xlu0 %1106
        %1108 = vrot.lane.b32.xlu0 %v1100, 127
        %v1109 = vpop.permute.xlu0 %1108
        %v1110 = vsel %vm647, %v1105, %v1107
        %v1111 = vsel %vm647, %v1107, %v1109
        %1114 = vst [vmem:[#allocation5 + $0x50] sm:$0xff] %v1110
        %1115 = vst [vmem:[#allocation5 + $0x58] sm:$0xff] %v1111
        %v1116 = vld [vmem:[#allocation3 + $0x8] sm:$0xff]
        %v1117 = vld [vmem:[#allocation3 + $0x10] sm:$0xff]
        %v1118 = vld [vmem:[#allocation3 + $0x18] sm:$0xff]
        %v1119 = vmul.f32 %v1116, %v754
        %v1120 = vmul.f32 %v1117, %v757
        %v1121 = vmul.f32 %v1118, %v756
        %1125 = vrot.lane.b32.xlu0 %v1119, 113
        %v1126 = vpop.permute.xlu0 %1125
        %1127 = vrot.lane.b32.xlu0 %v1120, 113
        %v1128 = vpop.permute.xlu0 %1127
        %1129 = vrot.lane.b32.xlu0 %v1121, 113
        %v1130 = vpop.permute.xlu0 %1129
        %v1131 = vsel %vm595, %v1126, %v1128
        %v1132 = vsel %vm595, %v1128, %v1130
        %1135 = vst [vmem:[#allocation5 + $0x60] sm:$0xff] %v1131
        %1136 = vst [vmem:[#allocation5 + $0x68] sm:$0xff] %v1132
        %v1137 = vld [vmem:[#allocation3 + $0x8] sm:$0xff]
        %v1138 = vld [vmem:[#allocation3 + $0x10] sm:$0xff]
        %v1139 = vld [vmem:[#allocation3 + $0x18] sm:$0xff]
        %1143 = vrot.lane.b32.xlu0 %v1137, 112
        %v1144 = vpop.permute.xlu0 %1143
        %1145 = vrot.lane.b32.xlu0 %v1138, 112
        %v1146 = vpop.permute.xlu0 %1145
        %1147 = vrot.lane.b32.xlu0 %v1139, 112
        %v1148 = vpop.permute.xlu0 %1147
        %v1149 = vsel %vm821, %v1144, %v1146
        %v1150 = vsel %vm821, %v1146, %v1148
        %1153 = vst [vmem:[#allocation5 + $0x70] sm:$0xff] %v1149
        %1154 = vst [vmem:[#allocation5 + $0x78] sm:$0xff] %v1150
        %v1155 = vld [vmem:[#allocation3 + $0x8] sm:$0xff]
        %v1156 = vld [vmem:[#allocation3 + $0x10] sm:$0xff]
        %v1157 = vld [vmem:[#allocation3 + $0x18] sm:$0xff]
        %v1158 = vmul.f32 %v1155, %v841
        %v1159 = vmul.f32 %v1156, %v844
        %v1160 = vmul.f32 %v1157, %v843
        %1164 = vrot.lane.b32.xlu0 %v1158, 111
        %v1165 = vpop.permute.xlu0 %1164
        %1166 = vrot.lane.b32.xlu0 %v1159, 111
        %v1167 = vpop.permute.xlu0 %1166
        %1168 = vrot.lane.b32.xlu0 %v1160, 111
        %v1169 = vpop.permute.xlu0 %1168
        %v1170 = vsel %vm497, %v1165, %v1167
        %v1171 = vsel %vm497, %v1167, %v1169
        %1174 = vst [vmem:[#allocation5 + $0x80] sm:$0xff] %v1170
        %1175 = vst [vmem:[#allocation5 + $0x88] sm:$0xff] %v1171
        %v1176 = vld [vmem:[%s6] sm:$0xf]
        %v1177 = vld [vmem:[#allocation5] sm:$0xff]
        %v1178 = vld [vmem:[#allocation5 + $0x8] sm:$0xff]
        %v1179 = vld [vmem:[#allocation5 + $0x10] sm:$0xff]
        %v1180 = vld [vmem:[#allocation5 + $0x18] sm:$0xff]
        %v1181 = vld [vmem:[#allocation5 + $0x20] sm:$0xff]
        %v1182 = vld [vmem:[#allocation5 + $0x28] sm:$0xff]
        %v1183 = vld [vmem:[#allocation5 + $0x30] sm:$0xff]
        %v1184 = vld [vmem:[#allocation5 + $0x38] sm:$0xff]
        %v1185 = vld [vmem:[#allocation5 + $0x40] sm:$0xff]
        %v1186 = vld [vmem:[#allocation5 + $0x48] sm:$0xff]
        %v1187 = vld [vmem:[#allocation5 + $0x50] sm:$0xff]
        %v1188 = vld [vmem:[#allocation5 + $0x58] sm:$0xff]
        %v1189 = vld [vmem:[#allocation5 + $0x60] sm:$0xff]
        %v1190 = vld [vmem:[#allocation5 + $0x68] sm:$0xff]
        %v1191 = vld [vmem:[#allocation5 + $0x70] sm:$0xff]
        %v1192 = vld [vmem:[#allocation5 + $0x78] sm:$0xff]
        %v1193 = vld [vmem:[#allocation5 + $0x80] sm:$0xff]
        %v1194 = vld [vmem:[#allocation5 + $0x88] sm:$0xff]
        %v1195 = vld [vmem:[%s7] sm:$0xf]
        %1197 = vset.pattern.permute.xlu0 0
        %1198 = vperm.xlu0 %1197, %v1195
        %v1199 = vpop.permute.xlu0 %1198
        %vm1201 = vcmask 588800
        %v1203 = vsel %vm1201, %v1176, 0
        %1205 = vmatprep.subr.mxu0 0.0
        %1206 = vmatpush1.msra.mxu0 0.0
        %1207 = vmatprep.subr.mxu0 0.0
        %1208 = vmatpush1.msra.mxu0 0.0
        %1209 = vmatprep.subr.mxu0 0.0
        %1210 = vmatpush1.msra.mxu0 0.0
        %1211 = vmatprep.subr.mxu0 0.0
        %1212 = vmatpush1.msra.mxu0 0.0
        %1213 = vmatprep.subr.mxu0 0.0
        %1214 = vmatpush1.msra.mxu0 0.0
        %1215 = vmatprep.subr.mxu0 0.0
        %1216 = vmatpush1.msra.mxu0 0.0
        %1217 = vmatprep.subr.mxu0 0.0
        %1218 = vmatpush1.msra.mxu0 0.0
        %1219 = vmatprep.subr.mxu0 %v1194
        %1220 = vmatpush1.msra.mxu0 %v1193
        %1221 = vmatprep.subr.mxu0 %v1192
        %1222 = vmatpush1.msra.mxu0 %v1191
        %1223 = vmatprep.subr.mxu0 %v1190
        %1224 = vmatpush1.msra.mxu0 %v1189
        %1225 = vmatprep.subr.mxu0 %v1188
        %1226 = vmatpush1.msra.mxu0 %v1187
        %1227 = vmatprep.subr.mxu0 %v1186
        %1228 = vmatpush1.msra.mxu0 %v1185
        %1229 = vmatprep.subr.mxu0 %v1184
        %1230 = vmatpush1.msra.mxu0 %v1183
        %1231 = vmatprep.subr.mxu0 %v1182
        %1232 = vmatpush1.msra.mxu0 %v1181
        %1233 = vmatprep.subr.mxu0 %v1180
        %1234 = vmatpush1.msra.mxu0 %v1179
        %1235 = vmatprep.subr.mxu0 %v1178
        %1236 = vmatpush1.msra.mxu0 %v1177
        %1237 = vmatprep.subr.mxu0 0.0
        %1238 = vmatpush2.msra.mxu0 0.0
        %1239 = vmatprep.subr.mxu0 0.0
        %1240 = vmatpush2.msra.mxu0 0.0
        %1241 = vmatprep.subr.mxu0 0.0
        %1242 = vmatpush2.msra.mxu0 0.0
        %1243 = vmatprep.subr.mxu0 0.0
        %1244 = vmatpush2.msra.mxu0 0.0
        %1245 = vmatprep.subr.mxu0 0.0
        %1246 = vmatpush2.msra.mxu0 0.0
        %1247 = vmatprep.subr.mxu0 0.0
        %1248 = vmatpush2.msra.mxu0 0.0
        %1249 = vmatprep.subr.mxu0 0.0
        %1250 = vmatpush2.msra.mxu0 0.0
        %1251 = vmatprep.subr.mxu0 0.0
        %1252 = vmatpush2.msra.mxu0 0.0
        %1253 = vmatprep.subr.mxu0 0.0
        %1254 = vmatpush2.msra.mxu0 0.0
        %1255 = vmatprep.subr.mxu0 0.0
        %1256 = vmatpush2.msra.mxu0 0.0
        %1257 = vmatprep.subr.mxu0 0.0
        %1258 = vmatpush2.msra.mxu0 0.0
        %1259 = vmatprep.subr.mxu0 0.0
        %1260 = vmatpush2.msra.mxu0 0.0
        %1261 = vmatprep.subr.mxu0 0.0
        %1262 = vmatpush2.msra.mxu0 0.0
        %1263 = vmatprep.subr.mxu0 0.0
        %1264 = vmatpush2.msra.mxu0 0.0
        %1265 = vmatprep.subr.mxu0 0.0
        %1266 = vmatpush2.msra.mxu0 0.0
        %1267 = vmatprep.subr.mxu0 0.0
        %1268 = vmatpush2.msra.mxu0 0.0
        %1269 = vmatprep.mubr.f32.mxu0 0.0
        %1270 = vmatmul.mubr.f32.gmra.mxu0 %v1203
        %v1271 = vpop.f32.mrf.mxu0
        %v1272 = vadd.f32 %v1199, %v1271
        %v1273 = vpop.f32.mrf.mxu0
        %v1274 = vadd.f32 %v1199, %v1273
        %1275 = vdwg.mxu0
        %v1278 = vrot.slane %v998, 4
        %v1279 = vrot.slane %v1000, 4
        %v1282 = vadd.f32 %v1272, %v1278
        %v1283 = vadd.f32 %v1274, %v1279
        %v1284 = vmax.f32 %v1282, 0.0
        %v1285 = vmax.f32 %v1283, 0.0
        %v1288 = vcombine.low %v1284, %v1285
        %1290 = vst [vmem:[%s372] sm:$0xff] %v1288
        %s1291 = sand.u32 %s214, 1
        %s1292 = scalar_lea.sflag [#allocation8], %s1291
        %s1293 = sand.u32 %s214, 1
        %s1294 = smul.addr %s1293, 8
        %s1295 = scalar_lea.vmem [#allocation12], %s1294
        // Predicated region
        $region65: #{tpu_custom_call.1} parent=51 // pred_check
          %p1296 = pneg %p224
        $region66: #{tpu_custom_call.1} parent=51 // pred_check_branch
          %1298 = sbr.rel (%p1296) target = $region68
        $region67: #{tpu_custom_call.1} parent=51 // pred_region
          %s1300 = ssub.s32 128, 128
          %1301 = vsyncadd %s1292, %s1300
          %s1302 = smul.addr %s28, 2
          %s1303 = smul.addr %s1302, 64
          %s1304 = scalar_lea.hbm %s8, %s1303
          %s1306 = sshll.u32 %s1295, 4
          %s1307 = int_to_ptr.vmem [resolvable:$true] %s1306
          %1309 = dma.vmem_to_hbm [thread:$0]  %s1307, 128, %s1304, %s1292
        $region68: #{tpu_custom_call.1} parent=51 // pred_fallthru
          _
      $region52: #{tpu_custom_call.1} parent=5 // pred_fallthru
        _
      %p1310 = scmp.le.s32.totalorder 2, %s23
      // Predicated region
      $region69: #{tpu_custom_call.1} parent=5 // pred_check
        %p1311 = pneg %p1310
      $region70: #{tpu_custom_call.1} parent=5 // pred_check_branch
        %1313 = sbr.rel (%p1311) target = $region72
      $region71: #{tpu_custom_call.1} parent=5 // pred_region
        %s1314 = ssub.s32 %s23, 2
        // Predicated region
        $region73: #{tpu_custom_call.1} parent=71 // pred_check
          %p1315 = pneg %p230
        $region74: #{tpu_custom_call.1} parent=71 // pred_check_branch
          %1317 = sbr.rel (%p1315) target = $region76
        $region75: #{tpu_custom_call.1} parent=71 // pred_region
          %s1318 = sand.u32 %s215, 1
          %s1319 = scalar_lea.sflag [#allocation8], %s1318
          %s1320 = sand.u32 %s215, 1
          %s1321 = smul.addr %s1320, 8
          %s1322 = scalar_lea.vmem [#allocation12], %s1321
          %1323 = dma.done %s1319, 128
        $region76: #{tpu_custom_call.1} parent=71 // pred_fallthru
          _
      $region72: #{tpu_custom_call.1} parent=5 // pred_fallthru
        _
    $region6: #{tpu_custom_call.1} parent=1 // loop_footer
      %s27 = sadd.s32 1, %s23
    $region7: #{tpu_custom_call.1} parent=1 // loop_footer_branch
      %22 = sbr.rel target = $region3
    $region8: #{tpu_custom_call.1} parent=1 // loop_exit
      _
    %1324 = vsyncpa [#allocation7], 1
    %s1325 = scalar_lea.sflag [#allocation7], 1
    %1326 = vsyncpa %s1325, 1
    %1327 = vsyncpa [#allocation10], 1
    %s1328 = scalar_lea.sflag [#allocation10], 1
    %1329 = vsyncpa %s1328, 1
    %1330 = vsyncpa [#allocation8], 1
    %s1331 = scalar_lea.sflag [#allocation8], 1
    %1332 = vsyncpa %s1331, 1

</llo_original>
